<compile_context>
chip_gen: v7x
topology: tpu7x:2x2x1
jax: 0.10.0
libtpu: 0.0.40
codegen_flags: <defaults>
</compile_context>

<pallas_src>
import functools

import jax
import jax.numpy as jnp
from jax.experimental import pallas as pl
from jax.experimental.pallas import tpu as pltpu


# ----------------------------------------------------------------------------
# Mask construction (equivalent of get_masks, pure JAX glue)
# ----------------------------------------------------------------------------
def get_masks(full_imsize, inner_imsize):
    half_delta = (full_imsize - inner_imsize) // 2
    idx = jnp.arange(full_imsize)
    in_range = (idx >= half_delta) & (idx < half_delta + inner_imsize)
    inner_mask = (in_range[:, None] & in_range[None, :]).astype(jnp.float32)
    outer_mask = 1.0 - inner_mask
    return inner_mask, outer_mask


def _elu(v):
    # Same formula is used in the kernel and the pure-JAX reference.
    return jnp.where(v > 0, v, jnp.exp(jnp.minimum(v, 0.0)) - 1.0)


# ----------------------------------------------------------------------------
# Fused forward kernel (one grid step = one chunk of batch elements)
# ----------------------------------------------------------------------------
def _fused_forward_kernel(seg_ref, aux_ref,
                          w1_ref, b1_ref, w2_ref, b2_ref, w3_ref, b3_ref,
                          o_ref, *, W, NL, HID, C1P):
    """Whole GatedOuterSegPredictor forward for one batch chunk.

    Layout: channels live on sublanes, the M = BC*H*W pixels live on lanes.

    seg_ref : (1, 1, M) int32   flattened label map
    aux_ref : (5, M)    f32     [inner, x>0, x<W-1, y>0, y<H-1]
    w*_ref  : (nout, 9*cinp) bf16   tap-packed conv weights (cin zero-padded)
    b*_ref  : (nout, 1) f32
    o_ref   : (1, NL, M) f32    lane-dense output slab
    """
    f32, bf16 = jnp.float32, jnp.bfloat16
    M = o_ref.shape[-1]
    PAD = W + 1                       # covers the largest tap shift |dy*W+dx|

    seg = seg_ref[0]                  # (1, M) int32
    aux = aux_ref[...]                # (5, M) f32
    inner = aux[0:1, :]
    outer = 1.0 - inner               # derived in-kernel (one fewer operand)
    ok_l = aux[1:2, :].astype(bf16)   # dx = -1 stays inside the row
    ok_r = aux[2:3, :].astype(bf16)   # dx = +1
    ok_t = aux[3:4, :].astype(bf16)   # dy = -1 stays inside the image
    ok_b = aux[4:5, :].astype(bf16)   # dy = +1

    # Per-tap validity masks, built once and reused by all three convs.
    taps_meta = []
    for dy in (-1, 0, 1):
        for dx in (-1, 0, 1):
            m = None
            for cond, msk in ((dy == -1, ok_t), (dy == 1, ok_b),
                              (dx == -1, ok_l), (dx == 1, ok_r)):
                if cond:
                    m = msk if m is None else m * msk
            taps_meta.append((dy * W + dx, m))

    def conv3x3(x, w_ref, b_ref):
        """3x3 'same' conv as a single MXU matmul; x:(CIN,M) bf16 -> (NOUT,M) f32."""
        cin = x.shape[0]
        zpad = jnp.zeros((cin, PAD), bf16)
        xw = jnp.concatenate([zpad, x, zpad], axis=1)        # (CIN, M + 2*PAD)
        taps = []
        for s, m in taps_meta:
            t = xw[:, PAD + s: PAD + s + M]                  # lane-shifted window
            taps.append(t if m is None else t * m)           # mask out-of-image taps
        xcat = jnp.concatenate(taps, axis=0)                 # (9*CIN, M), in registers
        acc = jnp.dot(w_ref[...], xcat, preferred_element_type=jnp.float32)
        return acc + b_ref[...]                              # (NOUT,1) bias, lane bcast

    def gate(a):
        # Channel axis = sublanes; HID is a multiple of 8 -> clean sublane split.
        feat, g = a[:HID, :], a[HID:, :]
        return (_elu(feat) * jax.nn.sigmoid(g)).astype(bf16)

    # Layer-1 input, channel(sublane)-major: [one_hot(seg) | outer_mask | 0-pad].
    rowi = jax.lax.broadcasted_iota(jnp.int32, (C1P, M), 0)
    onehot_p = (seg == rowi).astype(f32)                     # rows >= NL are zero
    x1 = jnp.where(rowi == NL, outer, onehot_p).astype(bf16)

    h = gate(conv3x3(x1, w1_ref, b1_ref))                    # (HID, M)
    h = gate(conv3x3(h, w2_ref, b2_ref))                     # (HID, M)
    net = conv3x3(h, w3_ref, b3_ref)                         # (NL, M), no final tanh

    # out = one_hot * inner_mask + net_out * outer_mask, lane-dense (NL, M).
    o_ref[0] = onehot_p[:NL, :] * inner + net * outer


# ----------------------------------------------------------------------------
# Wrapper: weight packing + pallas_call
# ----------------------------------------------------------------------------
def gated_outer_seg_predictor(full_seg, params, inner_mask, outer_mask=None):
    """full_seg: (B, H, W) int labels -> (B, n_labels, H, W) float32 (NCHW)."""
    del outer_mask  # derived as 1 - inner inside the kernel
    B, H, W = full_seg.shape
    NL = params["w3"].shape[-1]
    HID = params["w2"].shape[2]
    C1 = NL + 1                                   # one-hot + outer-mask channel
    C1P = ((C1 + 7) // 8) * 8                     # pad layer-1 cin to sublane mult.

    # >=2 grid steps keep both v7x TensorCores busy; batch elements inside a
    # chunk fold into the matmul lane dimension (M = BC * H * W).
    nchunk = 2 if (B >= 2 and B % 2 == 0) else 1
    BC = B // nchunk
    M = BC * H * W

    def prep_w(w, cinp):                          # (3,3,cin,nout) -> (nout, 9*cinp)
        cin = w.shape[2]
        wp = jnp.pad(w.astype(jnp.float32),
                     ((0, 0), (0, 0), (0, cinp - cin), (0, 0)))
        return wp.reshape(9 * cinp, -1).T.astype(jnp.bfloat16)

    w1p = prep_w(params["w1"], C1P)
    w2p = prep_w(params["w2"], HID)
    w3p = prep_w(params["w3"], HID)
    b1p = params["b1"].astype(jnp.float32).reshape(-1, 1)
    b2p = params["b2"].astype(jnp.float32).reshape(-1, 1)
    b3p = params["b3"].astype(jnp.float32).reshape(-1, 1)

    seg_in = full_seg.astype(jnp.int32).reshape(nchunk, 1, M)

    # aux rows: inner mask + the four conv-tap validity masks, tiled per chunk elem.
    f32 = jnp.float32
    ys = jnp.arange(H)[:, None]
    xs = jnp.arange(W)[None, :]
    rows = jnp.stack([
        inner_mask.astype(f32).reshape(-1),
        jnp.broadcast_to(xs > 0, (H, W)).astype(f32).reshape(-1),
        jnp.broadcast_to(xs < W - 1, (H, W)).astype(f32).reshape(-1),
        jnp.broadcast_to(ys > 0, (H, W)).astype(f32).reshape(-1),
        jnp.broadcast_to(ys < H - 1, (H, W)).astype(f32).reshape(-1),
    ], axis=0)                                    # (5, H*W)
    aux = jnp.tile(rows, (1, BC))                 # (5, M)

    kern = functools.partial(_fused_forward_kernel,
                             W=W, NL=NL, HID=HID, C1P=C1P)
    fixed = lambda i: (0, 0)

    out = pl.pallas_call(
        kern,
        out_shape=jax.ShapeDtypeStruct((nchunk, NL, M), jnp.float32),
        grid=(nchunk,),
        in_specs=[
            pl.BlockSpec((1, 1, M), lambda i: (i, 0, 0)),        # seg labels
            pl.BlockSpec((5, M), fixed),                         # inner + tap masks
            pl.BlockSpec((2 * HID, 9 * C1P), fixed),             # w1 (bf16, packed)
            pl.BlockSpec((2 * HID, 1), fixed),                   # b1
            pl.BlockSpec((2 * HID, 9 * HID), fixed),             # w2
            pl.BlockSpec((2 * HID, 1), fixed),                   # b2
            pl.BlockSpec((NL, 9 * HID), fixed),                  # w3
            pl.BlockSpec((NL, 1), fixed),                        # b3
        ],
        out_specs=pl.BlockSpec((1, NL, M), lambda i: (i, 0, 0)),
        compiler_params=pltpu.CompilerParams(
            dimension_semantics=("parallel",),
            vmem_limit_bytes=32 * 1024 * 1024),
    )(seg_in, aux, w1p, b1p, w2p, b2p, w3p, b3p)

    if BC == 1:
        # (B, NL, H*W) -> (B, NL, H, W) is metadata-only: no external permute.
        return out.reshape(B, NL, H, W)
    # Lanes are (b_in_chunk, pixel): unfold, tiny permute, reshape.
    return (out.reshape(nchunk, NL, BC, H * W)
               .transpose(0, 2, 1, 3).reshape(B, NL, H, W))


# ----------------------------------------------------------------------------
# Pure-JAX reference of the same (stand-in) forward, for correctness checking
# ----------------------------------------------------------------------------
def reference_forward(full_seg, params, inner_mask, outer_mask):
    B, H, W = full_seg.shape
    NL = params["w3"].shape[-1]
    onehot = jax.nn.one_hot(full_seg, NL, dtype=jnp.float32)          # (B,H,W,NL)
    outer_c = jnp.broadcast_to(outer_mask[None, :, :, None], (B, H, W, 1))
    x = jnp.concatenate([onehot, outer_c], axis=-1)

    def conv(x, w, b):
        y = jax.lax.conv_general_dilated(
            x.astype(jnp.bfloat16), w.astype(jnp.bfloat16),
            window_strides=(1, 1), padding="SAME",
            dimension_numbers=("NHWC", "HWIO", "NHWC"),
            preferred_element_type=jnp.float32)
        return y + b.reshape(1, 1, 1, -1).astype(jnp.float32)

    def gate(a):
        hid = a.shape[-1] // 2
        return _elu(a[..., :hid]) * jax.nn.sigmoid(a[..., hid:])

    h = gate(conv(x, params["w1"], params["b1"]))
    h = gate(conv(h, params["w2"], params["b2"]))
    net = conv(h, params["w3"], params["b3"])                          # (B,H,W,NL)
    out = (onehot * inner_mask[None, :, :, None]
           + net * outer_mask[None, :, :, None])
    return jnp.transpose(out, (0, 3, 1, 2))


# ----------------------------------------------------------------------------
# Parameters (deterministic stand-in GatedGenerator weights)
# ----------------------------------------------------------------------------
def init_params(key, n_labels, hidden):
    cin0 = n_labels + 1  # one-hot seg + outer-mask channel
    k1, k2, k3, k4, k5, k6 = jax.random.split(key, 6)
    s = 0.1
    return {
        "w1": s * jax.random.normal(k1, (3, 3, cin0, 2 * hidden), jnp.float32),
        "b1": 0.05 * jax.random.normal(k4, (2 * hidden,), jnp.float32),
        "w2": s * jax.random.normal(k2, (3, 3, hidden, 2 * hidden), jnp.float32),
        "b2": 0.05 * jax.random.normal(k5, (2 * hidden,), jnp.float32),
        "w3": s * jax.random.normal(k3, (3, 3, hidden, n_labels), jnp.float32),
        "b3": 0.05 * jax.random.normal(k6, (n_labels,), jnp.float32),
    }


# ----------------------------------------------------------------------------
if __name__ == "__main__":
    # cfg.dataset.imsize=16, cfg.dataset.inner_imsize=8, cfg.dataset.n_labels=4
    B, IMSIZE, INNER, N_LABELS, HIDDEN = 2, 16, 8, 4, 16

    key = jax.random.PRNGKey(0)
    k_lbl, k_par = jax.random.split(key)
    full_seg = jax.random.randint(k_lbl, (B, IMSIZE, IMSIZE), 0, N_LABELS,
                                  dtype=jnp.int32)
    params = init_params(k_par, N_LABELS, HIDDEN)
    inner_mask, outer_mask = get_masks(IMSIZE, INNER)

    fwd = jax.jit(gated_outer_seg_predictor)
    out = jax.block_until_ready(fwd(full_seg, params, inner_mask, outer_mask))

    assert out.shape == (B, N_LABELS, IMSIZE, IMSIZE), out.shape
    assert out.dtype == jnp.float32
    assert bool(jnp.isfinite(out).all())

    ref = reference_forward(full_seg, params, inner_mask, outer_mask)
    max_err = float(jnp.max(jnp.abs(out - ref)))
    assert bool(jnp.allclose(out, ref, atol=2e-2, rtol=2e-2)), max_err

    print("KERNEL_OK")
</pallas_src>

<mosaic_0001>
module attributes {stable_mosaic.version = 11 : i64} {
  func.func @_fused_forward_kernel(%arg0: i32, %arg1: memref<1x1x256xi32, #tpu.memory_space<vmem>>, %arg2: memref<5x256xf32, #tpu.memory_space<vmem>>, %arg3: memref<32x72xbf16, #tpu.memory_space<vmem>>, %arg4: memref<32x1xf32, #tpu.memory_space<vmem>>, %arg5: memref<32x144xbf16, #tpu.memory_space<vmem>>, %arg6: memref<32x1xf32, #tpu.memory_space<vmem>>, %arg7: memref<4x144xbf16, #tpu.memory_space<vmem>>, %arg8: memref<4x1xf32, #tpu.memory_space<vmem>>, %arg9: memref<1x4x256xf32, #tpu.memory_space<vmem>>) attributes {dimension_semantics = [#tpu.dimension_semantics<parallel>], iteration_bounds = array<i64: 2>, scalar_prefetch = 0 : i64, scratch_operands = 0 : i64, tpu.core_type = #tpu.core_type<tc>, window_params = [{transform_indices = @transform_0, window_bounds = array<i64: 1, 1, 256>}, {pipeline_mode = #tpu.pipeline_mode<synchronous>, transform_indices = @transform_1, window_bounds = array<i64: 5, 256>}, {pipeline_mode = #tpu.pipeline_mode<synchronous>, transform_indices = @transform_2, window_bounds = array<i64: 32, 72>}, {pipeline_mode = #tpu.pipeline_mode<synchronous>, transform_indices = @transform_3, window_bounds = array<i64: 32, 1>}, {pipeline_mode = #tpu.pipeline_mode<synchronous>, transform_indices = @transform_4, window_bounds = array<i64: 32, 144>}, {pipeline_mode = #tpu.pipeline_mode<synchronous>, transform_indices = @transform_5, window_bounds = array<i64: 32, 1>}, {pipeline_mode = #tpu.pipeline_mode<synchronous>, transform_indices = @transform_6, window_bounds = array<i64: 4, 144>}, {pipeline_mode = #tpu.pipeline_mode<synchronous>, transform_indices = @transform_7, window_bounds = array<i64: 4, 1>}, {transform_indices = @transform_8, window_bounds = array<i64: 1, 4, 256>}]} {
    %c0 = arith.constant 0 : index
    %c0_0 = arith.constant 0 : index
    %c0_1 = arith.constant 0 : index
    %0 = vector.load %arg1[%c0, %c0_0, %c0_1] : memref<1x1x256xi32, #tpu.memory_space<vmem>>, vector<1x1x256xi32>
    %1 = vector.shape_cast %0 : vector<1x1x256xi32> to vector<1x256xi32>
    %c0_2 = arith.constant 0 : index
    %c0_3 = arith.constant 0 : index
    %2 = vector.load %arg2[%c0_2, %c0_3] : memref<5x256xf32, #tpu.memory_space<vmem>>, vector<5x256xf32>
    %3 = vector.extract_strided_slice %2 {offsets = [0, 0], sizes = [1, 256], strides = [1, 1]} : vector<5x256xf32> to vector<1x256xf32>
    %cst = arith.constant 1.000000e+00 : f32
    %4 = vector.broadcast %cst : f32 to vector<1x256xf32>
    %5 = arith.subf %4, %3 : vector<1x256xf32>
    %6 = vector.extract_strided_slice %2 {offsets = [1, 0], sizes = [1, 256], strides = [1, 1]} : vector<5x256xf32> to vector<1x256xf32>
    %7 = arith.truncf %6 : vector<1x256xf32> to vector<1x256xbf16>
    %8 = vector.extract_strided_slice %2 {offsets = [2, 0], sizes = [1, 256], strides = [1, 1]} : vector<5x256xf32> to vector<1x256xf32>
    %9 = arith.truncf %8 : vector<1x256xf32> to vector<1x256xbf16>
    %10 = vector.extract_strided_slice %2 {offsets = [3, 0], sizes = [1, 256], strides = [1, 1]} : vector<5x256xf32> to vector<1x256xf32>
    %11 = arith.truncf %10 : vector<1x256xf32> to vector<1x256xbf16>
    %12 = vector.extract_strided_slice %2 {offsets = [4, 0], sizes = [1, 256], strides = [1, 1]} : vector<5x256xf32> to vector<1x256xf32>
    %13 = arith.truncf %12 : vector<1x256xf32> to vector<1x256xbf16>
    %14 = arith.mulf %11, %7 : vector<1x256xbf16>
    %15 = arith.mulf %11, %9 : vector<1x256xbf16>
    %16 = arith.mulf %13, %7 : vector<1x256xbf16>
    %17 = arith.mulf %13, %9 : vector<1x256xbf16>
    %18 = tpu.iota {dimensions = array<i32: 0>} : vector<8x256xi32>
    %19 = vector.broadcast %1 : vector<1x256xi32> to vector<8x256xi32>
    %20 = arith.cmpi eq, %19, %18 : vector<8x256xi32>
    %21 = arith.extui %20 : vector<8x256xi1> to vector<8x256xi32>
    %22 = arith.sitofp %21 : vector<8x256xi32> to vector<8x256xf32>
    %c4_i32 = arith.constant 4 : i32
    %23 = vector.broadcast %c4_i32 : i32 to vector<8x256xi32>
    %24 = arith.cmpi eq, %18, %23 : vector<8x256xi32>
    %25 = vector.shape_cast %5 : vector<1x256xf32> to vector<1x256xf32>
    %26 = vector.broadcast %25 : vector<1x256xf32> to vector<8x256xf32>
    %27 = arith.select %24, %26, %22 : vector<8x256xi1>, vector<8x256xf32>
    %28 = arith.truncf %27 : vector<8x256xf32> to vector<8x256xbf16>
    %cst_4 = arith.constant 0.000000e+00 : bf16
    %29 = vector.broadcast %cst_4 : bf16 to vector<8x17xbf16>
    %30 = tpu.concatenate %29, %28, %29 in 1 : vector<8x17xbf16>, vector<8x256xbf16>, vector<8x17xbf16> -> vector<8x290xbf16>
    %31 = vector.extract_strided_slice %30 {offsets = [0, 0], sizes = [8, 256], strides = [1, 1]} : vector<8x290xbf16> to vector<8x256xbf16>
    %32 = vector.broadcast %14 : vector<1x256xbf16> to vector<8x256xbf16>
    %33 = arith.mulf %31, %32 : vector<8x256xbf16>
    %34 = vector.extract_strided_slice %30 {offsets = [0, 1], sizes = [8, 256], strides = [1, 1]} : vector<8x290xbf16> to vector<8x256xbf16>
    %35 = vector.broadcast %11 : vector<1x256xbf16> to vector<8x256xbf16>
    %36 = arith.mulf %34, %35 : vector<8x256xbf16>
    %37 = vector.extract_strided_slice %30 {offsets = [0, 2], sizes = [8, 256], strides = [1, 1]} : vector<8x290xbf16> to vector<8x256xbf16>
    %38 = vector.broadcast %15 : vector<1x256xbf16> to vector<8x256xbf16>
    %39 = arith.mulf %37, %38 : vector<8x256xbf16>
    %40 = vector.extract_strided_slice %30 {offsets = [0, 16], sizes = [8, 256], strides = [1, 1]} : vector<8x290xbf16> to vector<8x256xbf16>
    %41 = vector.broadcast %7 : vector<1x256xbf16> to vector<8x256xbf16>
    %42 = arith.mulf %40, %41 : vector<8x256xbf16>
    %43 = vector.extract_strided_slice %30 {offsets = [0, 17], sizes = [8, 256], strides = [1, 1]} : vector<8x290xbf16> to vector<8x256xbf16>
    %44 = vector.extract_strided_slice %30 {offsets = [0, 18], sizes = [8, 256], strides = [1, 1]} : vector<8x290xbf16> to vector<8x256xbf16>
    %45 = vector.broadcast %9 : vector<1x256xbf16> to vector<8x256xbf16>
    %46 = arith.mulf %44, %45 : vector<8x256xbf16>
    %47 = vector.extract_strided_slice %30 {offsets = [0, 32], sizes = [8, 256], strides = [1, 1]} : vector<8x290xbf16> to vector<8x256xbf16>
    %48 = vector.broadcast %16 : vector<1x256xbf16> to vector<8x256xbf16>
    %49 = arith.mulf %47, %48 : vector<8x256xbf16>
    %50 = vector.extract_strided_slice %30 {offsets = [0, 33], sizes = [8, 256], strides = [1, 1]} : vector<8x290xbf16> to vector<8x256xbf16>
    %51 = vector.broadcast %13 : vector<1x256xbf16> to vector<8x256xbf16>
    %52 = arith.mulf %50, %51 : vector<8x256xbf16>
    %53 = vector.extract_strided_slice %30 {offsets = [0, 34], sizes = [8, 256], strides = [1, 1]} : vector<8x290xbf16> to vector<8x256xbf16>
    %54 = vector.broadcast %17 : vector<1x256xbf16> to vector<8x256xbf16>
    %55 = arith.mulf %53, %54 : vector<8x256xbf16>
    %56 = tpu.concatenate %33, %36, %39, %42, %43, %46, %49, %52, %55 in 0 : vector<8x256xbf16>, vector<8x256xbf16>, vector<8x256xbf16>, vector<8x256xbf16>, vector<8x256xbf16>, vector<8x256xbf16>, vector<8x256xbf16>, vector<8x256xbf16>, vector<8x256xbf16> -> vector<72x256xbf16>
    %c0_5 = arith.constant 0 : index
    %c0_6 = arith.constant 0 : index
    %57 = vector.load %arg3[%c0_5, %c0_6] : memref<32x72xbf16, #tpu.memory_space<vmem>>, vector<32x72xbf16>
    %cst_7 = arith.constant dense<0.000000e+00> : vector<32x256xf32>
    %58 = tpu.matmul %57, %56, %cst_7 {dimension_numbers = #tpu.dot_dimension_numbers<[1], [0], [0], [1], [0, 0, 1, 1], [], []>} : vector<32x72xbf16>, vector<72x256xbf16>, vector<32x256xf32> -> vector<32x256xf32>
    %c0_8 = arith.constant 0 : index
    %c0_9 = arith.constant 0 : index
    %59 = vector.load %arg4[%c0_8, %c0_9] : memref<32x1xf32, #tpu.memory_space<vmem>>, vector<32x1xf32>
    %60 = vector.broadcast %59 : vector<32x1xf32> to vector<32x256xf32>
    %61 = arith.addf %58, %60 : vector<32x256xf32>
    %62 = vector.extract_strided_slice %61 {offsets = [0, 0], sizes = [16, 256], strides = [1, 1]} : vector<32x256xf32> to vector<16x256xf32>
    %63 = vector.extract_strided_slice %61 {offsets = [16, 0], sizes = [16, 256], strides = [1, 1]} : vector<32x256xf32> to vector<16x256xf32>
    %cst_10 = arith.constant 0.000000e+00 : f32
    %64 = vector.broadcast %cst_10 : f32 to vector<16x256xf32>
    %65 = arith.cmpf ogt, %62, %64 : vector<16x256xf32>
    %cst_11 = arith.constant 0.000000e+00 : f32
    %66 = vector.broadcast %cst_11 : f32 to vector<16x256xf32>
    %67 = arith.minimumf %62, %66 : vector<16x256xf32>
    %68 = math.exp %67 : vector<16x256xf32>
    %cst_12 = arith.constant 1.000000e+00 : f32
    %69 = vector.broadcast %cst_12 : f32 to vector<16x256xf32>
    %70 = arith.subf %68, %69 : vector<16x256xf32>
    %71 = arith.select %65, %62, %70 : vector<16x256xi1>, vector<16x256xf32>
    %72 = arith.negf %63 : vector<16x256xf32>
    %73 = math.exp %72 : vector<16x256xf32>
    %cst_13 = arith.constant 1.000000e+00 : f32
    %74 = vector.broadcast %cst_13 : f32 to vector<16x256xf32>
    %75 = arith.addf %74, %73 : vector<16x256xf32>
    %76 = arith.divf %74, %75 : vector<16x256xf32>
    %77 = arith.mulf %71, %76 : vector<16x256xf32>
    %78 = arith.truncf %77 : vector<16x256xf32> to vector<16x256xbf16>
    %cst_14 = arith.constant 0.000000e+00 : bf16
    %79 = vector.broadcast %cst_14 : bf16 to vector<16x17xbf16>
    %80 = tpu.concatenate %79, %78, %79 in 1 : vector<16x17xbf16>, vector<16x256xbf16>, vector<16x17xbf16> -> vector<16x290xbf16>
    %81 = vector.extract_strided_slice %80 {offsets = [0, 0], sizes = [16, 256], strides = [1, 1]} : vector<16x290xbf16> to vector<16x256xbf16>
    %82 = vector.broadcast %14 : vector<1x256xbf16> to vector<16x256xbf16>
    %83 = arith.mulf %81, %82 : vector<16x256xbf16>
    %84 = vector.extract_strided_slice %80 {offsets = [0, 1], sizes = [16, 256], strides = [1, 1]} : vector<16x290xbf16> to vector<16x256xbf16>
    %85 = vector.broadcast %11 : vector<1x256xbf16> to vector<16x256xbf16>
    %86 = arith.mulf %84, %85 : vector<16x256xbf16>
    %87 = vector.extract_strided_slice %80 {offsets = [0, 2], sizes = [16, 256], strides = [1, 1]} : vector<16x290xbf16> to vector<16x256xbf16>
    %88 = vector.broadcast %15 : vector<1x256xbf16> to vector<16x256xbf16>
    %89 = arith.mulf %87, %88 : vector<16x256xbf16>
    %90 = vector.extract_strided_slice %80 {offsets = [0, 16], sizes = [16, 256], strides = [1, 1]} : vector<16x290xbf16> to vector<16x256xbf16>
    %91 = vector.broadcast %7 : vector<1x256xbf16> to vector<16x256xbf16>
    %92 = arith.mulf %90, %91 : vector<16x256xbf16>
    %93 = vector.extract_strided_slice %80 {offsets = [0, 17], sizes = [16, 256], strides = [1, 1]} : vector<16x290xbf16> to vector<16x256xbf16>
    %94 = vector.extract_strided_slice %80 {offsets = [0, 18], sizes = [16, 256], strides = [1, 1]} : vector<16x290xbf16> to vector<16x256xbf16>
    %95 = vector.broadcast %9 : vector<1x256xbf16> to vector<16x256xbf16>
    %96 = arith.mulf %94, %95 : vector<16x256xbf16>
    %97 = vector.extract_strided_slice %80 {offsets = [0, 32], sizes = [16, 256], strides = [1, 1]} : vector<16x290xbf16> to vector<16x256xbf16>
    %98 = vector.broadcast %16 : vector<1x256xbf16> to vector<16x256xbf16>
    %99 = arith.mulf %97, %98 : vector<16x256xbf16>
    %100 = vector.extract_strided_slice %80 {offsets = [0, 33], sizes = [16, 256], strides = [1, 1]} : vector<16x290xbf16> to vector<16x256xbf16>
    %101 = vector.broadcast %13 : vector<1x256xbf16> to vector<16x256xbf16>
    %102 = arith.mulf %100, %101 : vector<16x256xbf16>
    %103 = vector.extract_strided_slice %80 {offsets = [0, 34], sizes = [16, 256], strides = [1, 1]} : vector<16x290xbf16> to vector<16x256xbf16>
    %104 = vector.broadcast %17 : vector<1x256xbf16> to vector<16x256xbf16>
    %105 = arith.mulf %103, %104 : vector<16x256xbf16>
    %106 = tpu.concatenate %83, %86, %89, %92, %93, %96, %99, %102, %105 in 0 : vector<16x256xbf16>, vector<16x256xbf16>, vector<16x256xbf16>, vector<16x256xbf16>, vector<16x256xbf16>, vector<16x256xbf16>, vector<16x256xbf16>, vector<16x256xbf16>, vector<16x256xbf16> -> vector<144x256xbf16>
    %c0_15 = arith.constant 0 : index
    %c0_16 = arith.constant 0 : index
    %107 = vector.load %arg5[%c0_15, %c0_16] : memref<32x144xbf16, #tpu.memory_space<vmem>>, vector<32x144xbf16>
    %cst_17 = arith.constant dense<0.000000e+00> : vector<32x256xf32>
    %108 = tpu.matmul %107, %106, %cst_17 {dimension_numbers = #tpu.dot_dimension_numbers<[1], [0], [0], [1], [0, 0, 1, 1], [], []>} : vector<32x144xbf16>, vector<144x256xbf16>, vector<32x256xf32> -> vector<32x256xf32>
    %c0_18 = arith.constant 0 : index
    %c0_19 = arith.constant 0 : index
    %109 = vector.load %arg6[%c0_18, %c0_19] : memref<32x1xf32, #tpu.memory_space<vmem>>, vector<32x1xf32>
    %110 = vector.broadcast %109 : vector<32x1xf32> to vector<32x256xf32>
    %111 = arith.addf %108, %110 : vector<32x256xf32>
    %112 = vector.extract_strided_slice %111 {offsets = [0, 0], sizes = [16, 256], strides = [1, 1]} : vector<32x256xf32> to vector<16x256xf32>
    %113 = vector.extract_strided_slice %111 {offsets = [16, 0], sizes = [16, 256], strides = [1, 1]} : vector<32x256xf32> to vector<16x256xf32>
    %cst_20 = arith.constant 0.000000e+00 : f32
    %114 = vector.broadcast %cst_20 : f32 to vector<16x256xf32>
    %115 = arith.cmpf ogt, %112, %114 : vector<16x256xf32>
    %cst_21 = arith.constant 0.000000e+00 : f32
    %116 = vector.broadcast %cst_21 : f32 to vector<16x256xf32>
    %117 = arith.minimumf %112, %116 : vector<16x256xf32>
    %118 = math.exp %117 : vector<16x256xf32>
    %cst_22 = arith.constant 1.000000e+00 : f32
    %119 = vector.broadcast %cst_22 : f32 to vector<16x256xf32>
    %120 = arith.subf %118, %119 : vector<16x256xf32>
    %121 = arith.select %115, %112, %120 : vector<16x256xi1>, vector<16x256xf32>
    %122 = arith.negf %113 : vector<16x256xf32>
    %123 = math.exp %122 : vector<16x256xf32>
    %cst_23 = arith.constant 1.000000e+00 : f32
    %124 = vector.broadcast %cst_23 : f32 to vector<16x256xf32>
    %125 = arith.addf %124, %123 : vector<16x256xf32>
    %126 = arith.divf %124, %125 : vector<16x256xf32>
    %127 = arith.mulf %121, %126 : vector<16x256xf32>
    %128 = arith.truncf %127 : vector<16x256xf32> to vector<16x256xbf16>
    %cst_24 = arith.constant 0.000000e+00 : bf16
    %129 = vector.broadcast %cst_24 : bf16 to vector<16x17xbf16>
    %130 = tpu.concatenate %129, %128, %129 in 1 : vector<16x17xbf16>, vector<16x256xbf16>, vector<16x17xbf16> -> vector<16x290xbf16>
    %131 = vector.extract_strided_slice %130 {offsets = [0, 0], sizes = [16, 256], strides = [1, 1]} : vector<16x290xbf16> to vector<16x256xbf16>
    %132 = vector.broadcast %14 : vector<1x256xbf16> to vector<16x256xbf16>
    %133 = arith.mulf %131, %132 : vector<16x256xbf16>
    %134 = vector.extract_strided_slice %130 {offsets = [0, 1], sizes = [16, 256], strides = [1, 1]} : vector<16x290xbf16> to vector<16x256xbf16>
    %135 = vector.broadcast %11 : vector<1x256xbf16> to vector<16x256xbf16>
    %136 = arith.mulf %134, %135 : vector<16x256xbf16>
    %137 = vector.extract_strided_slice %130 {offsets = [0, 2], sizes = [16, 256], strides = [1, 1]} : vector<16x290xbf16> to vector<16x256xbf16>
    %138 = vector.broadcast %15 : vector<1x256xbf16> to vector<16x256xbf16>
    %139 = arith.mulf %137, %138 : vector<16x256xbf16>
    %140 = vector.extract_strided_slice %130 {offsets = [0, 16], sizes = [16, 256], strides = [1, 1]} : vector<16x290xbf16> to vector<16x256xbf16>
    %141 = vector.broadcast %7 : vector<1x256xbf16> to vector<16x256xbf16>
    %142 = arith.mulf %140, %141 : vector<16x256xbf16>
    %143 = vector.extract_strided_slice %130 {offsets = [0, 17], sizes = [16, 256], strides = [1, 1]} : vector<16x290xbf16> to vector<16x256xbf16>
    %144 = vector.extract_strided_slice %130 {offsets = [0, 18], sizes = [16, 256], strides = [1, 1]} : vector<16x290xbf16> to vector<16x256xbf16>
    %145 = vector.broadcast %9 : vector<1x256xbf16> to vector<16x256xbf16>
    %146 = arith.mulf %144, %145 : vector<16x256xbf16>
    %147 = vector.extract_strided_slice %130 {offsets = [0, 32], sizes = [16, 256], strides = [1, 1]} : vector<16x290xbf16> to vector<16x256xbf16>
    %148 = vector.broadcast %16 : vector<1x256xbf16> to vector<16x256xbf16>
    %149 = arith.mulf %147, %148 : vector<16x256xbf16>
    %150 = vector.extract_strided_slice %130 {offsets = [0, 33], sizes = [16, 256], strides = [1, 1]} : vector<16x290xbf16> to vector<16x256xbf16>
    %151 = vector.broadcast %13 : vector<1x256xbf16> to vector<16x256xbf16>
    %152 = arith.mulf %150, %151 : vector<16x256xbf16>
    %153 = vector.extract_strided_slice %130 {offsets = [0, 34], sizes = [16, 256], strides = [1, 1]} : vector<16x290xbf16> to vector<16x256xbf16>
    %154 = vector.broadcast %17 : vector<1x256xbf16> to vector<16x256xbf16>
    %155 = arith.mulf %153, %154 : vector<16x256xbf16>
    %156 = tpu.concatenate %133, %136, %139, %142, %143, %146, %149, %152, %155 in 0 : vector<16x256xbf16>, vector<16x256xbf16>, vector<16x256xbf16>, vector<16x256xbf16>, vector<16x256xbf16>, vector<16x256xbf16>, vector<16x256xbf16>, vector<16x256xbf16>, vector<16x256xbf16> -> vector<144x256xbf16>
    %c0_25 = arith.constant 0 : index
    %c0_26 = arith.constant 0 : index
    %157 = vector.load %arg7[%c0_25, %c0_26] : memref<4x144xbf16, #tpu.memory_space<vmem>>, vector<4x144xbf16>
    %cst_27 = arith.constant dense<0.000000e+00> : vector<4x256xf32>
    %158 = tpu.matmul %157, %156, %cst_27 {dimension_numbers = #tpu.dot_dimension_numbers<[1], [0], [0], [1], [0, 0, 1, 1], [], []>} : vector<4x144xbf16>, vector<144x256xbf16>, vector<4x256xf32> -> vector<4x256xf32>
    %c0_28 = arith.constant 0 : index
    %c0_29 = arith.constant 0 : index
    %159 = vector.load %arg8[%c0_28, %c0_29] : memref<4x1xf32, #tpu.memory_space<vmem>>, vector<4x1xf32>
    %160 = vector.broadcast %159 : vector<4x1xf32> to vector<4x256xf32>
    %161 = arith.addf %158, %160 : vector<4x256xf32>
    %162 = vector.extract_strided_slice %22 {offsets = [0, 0], sizes = [4, 256], strides = [1, 1]} : vector<8x256xf32> to vector<4x256xf32>
    %163 = vector.broadcast %3 : vector<1x256xf32> to vector<4x256xf32>
    %164 = arith.mulf %162, %163 : vector<4x256xf32>
    %165 = vector.broadcast %5 : vector<1x256xf32> to vector<4x256xf32>
    %166 = arith.mulf %161, %165 : vector<4x256xf32>
    %167 = arith.addf %164, %166 : vector<4x256xf32>
    %c0_30 = arith.constant 0 : index
    %c0_31 = arith.constant 0 : index
    %c0_32 = arith.constant 0 : index
    %168 = vector.load %arg9[%c0_30, %c0_31, %c0_32] : memref<1x4x256xf32, #tpu.memory_space<vmem>>, vector<1x4x256xf32>
    %169 = vector.shape_cast %168 : vector<1x4x256xf32> to vector<4x256xf32>
    %170 = vector.shape_cast %167 : vector<4x256xf32> to vector<1x4x256xf32>
    tpu.vector_store %arg9[%c0_30, %c0_31, %c0_32], %170 {strides = array<i32>} : memref<1x4x256xf32, #tpu.memory_space<vmem>>, vector<1x4x256xf32>,
    return
  }
  func.func @transform_0(%arg0: i32) -> (i32, i32, i32) {
    %c0_i32 = arith.constant 0 : i32
    %c0_i32_0 = arith.constant 0 : i32
    %c0_i32_1 = arith.constant 0 : i32
    return %arg0, %c0_i32, %c0_i32_0 : i32, i32, i32
  }
  func.func @transform_1(%arg0: i32) -> (i32, i32) {
    %c0_i32 = arith.constant 0 : i32
    %c0_i32_0 = arith.constant 0 : i32
    %c0_i32_1 = arith.constant 0 : i32
    return %c0_i32, %c0_i32_0 : i32, i32
  }
  func.func @transform_2(%arg0: i32) -> (i32, i32) {
    %c0_i32 = arith.constant 0 : i32
    %c0_i32_0 = arith.constant 0 : i32
    %c0_i32_1 = arith.constant 0 : i32
    return %c0_i32, %c0_i32_0 : i32, i32
  }
  func.func @transform_3(%arg0: i32) -> (i32, i32) {
    %c0_i32 = arith.constant 0 : i32
    %c0_i32_0 = arith.constant 0 : i32
    %c0_i32_1 = arith.constant 0 : i32
    return %c0_i32, %c0_i32_0 : i32, i32
  }
  func.func @transform_4(%arg0: i32) -> (i32, i32) {
    %c0_i32 = arith.constant 0 : i32
    %c0_i32_0 = arith.constant 0 : i32
    %c0_i32_1 = arith.constant 0 : i32
    return %c0_i32, %c0_i32_0 : i32, i32
  }
  func.func @transform_5(%arg0: i32) -> (i32, i32) {
    %c0_i32 = arith.constant 0 : i32
    %c0_i32_0 = arith.constant 0 : i32
    %c0_i32_1 = arith.constant 0 : i32
    return %c0_i32, %c0_i32_0 : i32, i32
  }
  func.func @transform_6(%arg0: i32) -> (i32, i32) {
    %c0_i32 = arith.constant 0 : i32
    %c0_i32_0 = arith.constant 0 : i32
    %c0_i32_1 = arith.constant 0 : i32
    return %c0_i32, %c0_i32_0 : i32, i32
  }
  func.func @transform_7(%arg0: i32) -> (i32, i32) {
    %c0_i32 = arith.constant 0 : i32
    %c0_i32_0 = arith.constant 0 : i32
    %c0_i32_1 = arith.constant 0 : i32
    return %c0_i32, %c0_i32_0 : i32, i32
  }
  func.func @transform_8(%arg0: i32) -> (i32, i32, i32) {
    %c0_i32 = arith.constant 0 : i32
    %c0_i32_0 = arith.constant 0 : i32
    %c0_i32_1 = arith.constant 0 : i32
    return %arg0, %c0_i32, %c0_i32_0 : i32, i32, i32
  }
}

</mosaic_0001>

<llo_original>
// kernel: gated_outer_seg_predictor.1
$region0: #{gated_outer_seg_predictor.1}
  #allocation0 [shape = 'u32[]', space=smem, size = 0x4, offset = 0x4, fixed_abs, tag = 'smem constant byte address 0x4 - core index']
  #allocation1 [shape = 'u32[144,128]{1,0:T(1,128)}', space=vmem, size = 0x12000, scoped, tag = 'internal scratch']
  %s0 = inlined_call_operand.vmem [shape: s32[2,1,256], index: 0, kind: input, shape index: {}]
  %s1 = inlined_call_operand.vmem [shape: f32[5,256], index: 1, kind: input, shape index: {}]
  %s2 = inlined_call_operand.vmem [shape: bf16[32,72], index: 2, kind: input, shape index: {}]
  %s3 = inlined_call_operand.vmem [shape: f32[32,1], index: 3, kind: input, shape index: {}]
  %s4 = inlined_call_operand.vmem [shape: bf16[32,144], index: 4, kind: input, shape index: {}]
  %s5 = inlined_call_operand.vmem [shape: f32[32,1], index: 5, kind: input, shape index: {}]
  %s6 = inlined_call_operand.vmem [shape: bf16[4,144], index: 6, kind: input, shape index: {}]
  %s7 = inlined_call_operand.vmem [shape: f32[4,1], index: 7, kind: input, shape index: {}]
  %s8 = inlined_call_operand.vmem [shape: f32[2,4,256], index: 8, kind: output, shape index: {}]
  %s9 = sld [smem:[#allocation0]]
  $region65: #{gated_outer_seg_predictor.1} parent=0
    _
  %s11 = ssub.s32 1, %s9
  %s12 = scalar_select 0, %s11, %s9
  loop: start=0, step=1, limit=4
  $region2: #{gated_outer_seg_predictor.1} parent=0 // loop_pre_header
    _
  $region3: #{gated_outer_seg_predictor.1} parent=0 // loop_header
    %s14 = sphi 0, %s18
    %p15 = scmp.ge.s32.totalorder %s14, 4
    %s24 = sphi 0, %s26
    %s27 = sphi 0, %s24
    %s28 = sphi 0, %s27
    %s44 = sphi 0, %s28
    %s48 = sphi 0, %s48
    %s50 = sphi 0, %s48
    %s51 = sphi 0, %s50
    %s65 = sphi 0, %s51
    %s69 = sphi 0, %s69
    %s71 = sphi 0, %s69
    %s72 = sphi 0, %s71
    %s86 = sphi 0, %s72
    %s90 = sphi 0, %s90
    %s92 = sphi 0, %s90
    %s93 = sphi 0, %s92
    %s107 = sphi 0, %s93
    %s111 = sphi 0, %s111
    %s113 = sphi 0, %s111
    %s114 = sphi 0, %s113
    %s128 = sphi 0, %s114
    %s132 = sphi 0, %s132
    %s134 = sphi 0, %s132
    %s135 = sphi 0, %s134
    %s149 = sphi 0, %s135
    %s153 = sphi 0, %s153
    %s155 = sphi 0, %s153
    %s156 = sphi 0, %s155
    %s170 = sphi 0, %s156
    %s174 = sphi 0, %s174
    %s176 = sphi 0, %s174
    %s177 = sphi 0, %s176
    %s191 = sphi 0, %s177
    %s197 = sphi 0, %s199
    %s200 = sphi 0, %s197
    %s201 = sphi 0, %s200
    %s217 = sphi 0, %s201
  $region4: #{gated_outer_seg_predictor.1} parent=0 // loop_header_branch
    %17 = sbr.rel (%p15) target = $region8
  $region5: #{gated_outer_seg_predictor.1} parent=0 // loop_body
    %s19 = ssub.s32 %s14, 1
    %s20 = ssub.s32 %s14, 2
    %s21 = sadd.s32 %s14, 1
    %s22 = ssub.s32 %s14, %s21
    %p23 = scmp.eq.s32.totalorder %s22, 0
    %s25 = sadd.s32 %s24, 1
    %s26 = scalar_select %p23, %s24, %s25
    %p29 = pneg %p23
    %p30 = scmp.eq.s32.totalorder %s14, 1
    %p31 = por %p29, %p30
    %p32 = scmp.ne.s32.totalorder %s24, %s27
    %p33 = scmp.eq.s32.totalorder %s14, 0
    %p34 = por %p32, %p33
    %p35 = scmp.ne.s32.totalorder %s24, %s27
    %p36 = scmp.eq.s32.totalorder %s19, 1
    %p37 = por %p35, %p36
    %p38 = scmp.ne.s32.totalorder %s27, %s28
    %p39 = scmp.eq.s32.totalorder %s19, 0
    %p40 = por %p38, %p39
    %p41 = scmp.ne.s32.totalorder %s27, %s28
    %p42 = scmp.eq.s32.totalorder %s20, 1
    %p43 = por %p41, %p42
    %p45 = scmp.ne.s32.totalorder %s28, %s44
    %p46 = scmp.eq.s32.totalorder %s20, 0
    %p47 = por %p45, %p46
    %s49 = sadd.s32 %s48, 1
    %p52 = scmp.eq.s32.totalorder %s14, 1
    %p53 = scmp.ne.s32.totalorder %s48, %s50
    %p54 = scmp.eq.s32.totalorder %s14, 0
    %p55 = por %p53, %p54
    %p56 = scmp.ne.s32.totalorder %s48, %s50
    %p57 = scmp.eq.s32.totalorder %s19, 1
    %p58 = por %p56, %p57
    %p59 = scmp.ne.s32.totalorder %s50, %s51
    %p60 = scmp.eq.s32.totalorder %s19, 0
    %p61 = por %p59, %p60
    %p62 = scmp.ne.s32.totalorder %s50, %s51
    %p63 = scmp.eq.s32.totalorder %s20, 1
    %p64 = por %p62, %p63
    %p66 = scmp.ne.s32.totalorder %s51, %s65
    %p67 = scmp.eq.s32.totalorder %s20, 0
    %p68 = por %p66, %p67
    %s70 = sadd.s32 %s69, 1
    %p73 = scmp.eq.s32.totalorder %s14, 1
    %p74 = scmp.ne.s32.totalorder %s69, %s71
    %p75 = scmp.eq.s32.totalorder %s14, 0
    %p76 = por %p74, %p75
    %p77 = scmp.ne.s32.totalorder %s69, %s71
    %p78 = scmp.eq.s32.totalorder %s19, 1
    %p79 = por %p77, %p78
    %p80 = scmp.ne.s32.totalorder %s71, %s72
    %p81 = scmp.eq.s32.totalorder %s19, 0
    %p82 = por %p80, %p81
    %p83 = scmp.ne.s32.totalorder %s71, %s72
    %p84 = scmp.eq.s32.totalorder %s20, 1
    %p85 = por %p83, %p84
    %p87 = scmp.ne.s32.totalorder %s72, %s86
    %p88 = scmp.eq.s32.totalorder %s20, 0
    %p89 = por %p87, %p88
    %s91 = sadd.s32 %s90, 1
    %p94 = scmp.eq.s32.totalorder %s14, 1
    %p95 = scmp.ne.s32.totalorder %s90, %s92
    %p96 = scmp.eq.s32.totalorder %s14, 0
    %p97 = por %p95, %p96
    %p98 = scmp.ne.s32.totalorder %s90, %s92
    %p99 = scmp.eq.s32.totalorder %s19, 1
    %p100 = por %p98, %p99
    %p101 = scmp.ne.s32.totalorder %s92, %s93
    %p102 = scmp.eq.s32.totalorder %s19, 0
    %p103 = por %p101, %p102
    %p104 = scmp.ne.s32.totalorder %s92, %s93
    %p105 = scmp.eq.s32.totalorder %s20, 1
    %p106 = por %p104, %p105
    %p108 = scmp.ne.s32.totalorder %s93, %s107
    %p109 = scmp.eq.s32.totalorder %s20, 0
    %p110 = por %p108, %p109
    %s112 = sadd.s32 %s111, 1
    %p115 = scmp.eq.s32.totalorder %s14, 1
    %p116 = scmp.ne.s32.totalorder %s111, %s113
    %p117 = scmp.eq.s32.totalorder %s14, 0
    %p118 = por %p116, %p117
    %p119 = scmp.ne.s32.totalorder %s111, %s113
    %p120 = scmp.eq.s32.totalorder %s19, 1
    %p121 = por %p119, %p120
    %p122 = scmp.ne.s32.totalorder %s113, %s114
    %p123 = scmp.eq.s32.totalorder %s19, 0
    %p124 = por %p122, %p123
    %p125 = scmp.ne.s32.totalorder %s113, %s114
    %p126 = scmp.eq.s32.totalorder %s20, 1
    %p127 = por %p125, %p126
    %p129 = scmp.ne.s32.totalorder %s114, %s128
    %p130 = scmp.eq.s32.totalorder %s20, 0
    %p131 = por %p129, %p130
    %s133 = sadd.s32 %s132, 1
    %p136 = scmp.eq.s32.totalorder %s14, 1
    %p137 = scmp.ne.s32.totalorder %s132, %s134
    %p138 = scmp.eq.s32.totalorder %s14, 0
    %p139 = por %p137, %p138
    %p140 = scmp.ne.s32.totalorder %s132, %s134
    %p141 = scmp.eq.s32.totalorder %s19, 1
    %p142 = por %p140, %p141
    %p143 = scmp.ne.s32.totalorder %s134, %s135
    %p144 = scmp.eq.s32.totalorder %s19, 0
    %p145 = por %p143, %p144
    %p146 = scmp.ne.s32.totalorder %s134, %s135
    %p147 = scmp.eq.s32.totalorder %s20, 1
    %p148 = por %p146, %p147
    %p150 = scmp.ne.s32.totalorder %s135, %s149
    %p151 = scmp.eq.s32.totalorder %s20, 0
    %p152 = por %p150, %p151
    %s154 = sadd.s32 %s153, 1
    %p157 = scmp.eq.s32.totalorder %s14, 1
    %p158 = scmp.ne.s32.totalorder %s153, %s155
    %p159 = scmp.eq.s32.totalorder %s14, 0
    %p160 = por %p158, %p159
    %p161 = scmp.ne.s32.totalorder %s153, %s155
    %p162 = scmp.eq.s32.totalorder %s19, 1
    %p163 = por %p161, %p162
    %p164 = scmp.ne.s32.totalorder %s155, %s156
    %p165 = scmp.eq.s32.totalorder %s19, 0
    %p166 = por %p164, %p165
    %p167 = scmp.ne.s32.totalorder %s155, %s156
    %p168 = scmp.eq.s32.totalorder %s20, 1
    %p169 = por %p167, %p168
    %p171 = scmp.ne.s32.totalorder %s156, %s170
    %p172 = scmp.eq.s32.totalorder %s20, 0
    %p173 = por %p171, %p172
    %s175 = sadd.s32 %s174, 1
    %p178 = scmp.eq.s32.totalorder %s14, 1
    %p179 = scmp.ne.s32.totalorder %s174, %s176
    %p180 = scmp.eq.s32.totalorder %s14, 0
    %p181 = por %p179, %p180
    %p182 = scmp.ne.s32.totalorder %s174, %s176
    %p183 = scmp.eq.s32.totalorder %s19, 1
    %p184 = por %p182, %p183
    %p185 = scmp.ne.s32.totalorder %s176, %s177
    %p186 = scmp.eq.s32.totalorder %s19, 0
    %p187 = por %p185, %p186
    %p188 = scmp.ne.s32.totalorder %s176, %s177
    %p189 = scmp.eq.s32.totalorder %s20, 1
    %p190 = por %p188, %p189
    %p192 = scmp.ne.s32.totalorder %s177, %s191
    %p193 = scmp.eq.s32.totalorder %s20, 0
    %p194 = por %p192, %p193
    %s195 = ssub.s32 %s14, %s21
    %p196 = scmp.eq.s32.totalorder %s195, 0
    %s198 = sadd.s32 %s197, 1
    %s199 = scalar_select %p196, %s197, %s198
    %p202 = pneg %p196
    %p203 = scmp.eq.s32.totalorder %s14, 1
    %p204 = por %p202, %p203
    %p205 = scmp.ne.s32.totalorder %s197, %s200
    %p206 = scmp.eq.s32.totalorder %s14, 0
    %p207 = por %p205, %p206
    %p208 = scmp.ne.s32.totalorder %s197, %s200
    %p209 = scmp.eq.s32.totalorder %s19, 1
    %p210 = por %p208, %p209
    %p211 = scmp.ne.s32.totalorder %s200, %s201
    %p212 = scmp.eq.s32.totalorder %s19, 0
    %p213 = por %p211, %p212
    %p214 = scmp.ne.s32.totalorder %s200, %s201
    %p215 = scmp.eq.s32.totalorder %s20, 1
    %p216 = por %p214, %p215
    %p218 = scmp.ne.s32.totalorder %s201, %s217
    %p219 = scmp.eq.s32.totalorder %s20, 0
    %p220 = por %p218, %p219
    %p221 = scmp.le.s32.totalorder 1, %s14
    %p222 = scmp.lt.s32.totalorder %s14, 3
    %p223 = pnand %p221, %p222
    %p224 = pneg %p223
    // Predicated region
    $region9: #{gated_outer_seg_predictor.1} parent=5 // pred_check
      _
    $region10: #{gated_outer_seg_predictor.1} parent=5 // pred_check_branch
      %226 = sbr.rel (%p223) target = $region12
    $region11: #{gated_outer_seg_predictor.1} parent=5 // pred_region
      %s227 = ssub.s32 %s14, 1
      // Predicated region
      $region13: #{gated_outer_seg_predictor.1} parent=11 // pred_check
        %p228 = pneg %p61
      $region14: #{gated_outer_seg_predictor.1} parent=11 // pred_check_branch
        %230 = sbr.rel (%p228) target = $region16
      $region15: #{gated_outer_seg_predictor.1} parent=11 // pred_region
        _
      $region16: #{gated_outer_seg_predictor.1} parent=11 // pred_fallthru
        _
      // Predicated region
      $region17: #{gated_outer_seg_predictor.1} parent=11 // pred_check
        %p231 = pneg %p82
      $region18: #{gated_outer_seg_predictor.1} parent=11 // pred_check_branch
        %233 = sbr.rel (%p231) target = $region20
      $region19: #{gated_outer_seg_predictor.1} parent=11 // pred_region
        _
      $region20: #{gated_outer_seg_predictor.1} parent=11 // pred_fallthru
        _
      // Predicated region
      $region21: #{gated_outer_seg_predictor.1} parent=11 // pred_check
        %p234 = pneg %p103
      $region22: #{gated_outer_seg_predictor.1} parent=11 // pred_check_branch
        %236 = sbr.rel (%p234) target = $region24
      $region23: #{gated_outer_seg_predictor.1} parent=11 // pred_region
        _
      $region24: #{gated_outer_seg_predictor.1} parent=11 // pred_fallthru
        _
      // Predicated region
      $region25: #{gated_outer_seg_predictor.1} parent=11 // pred_check
        %p237 = pneg %p124
      $region26: #{gated_outer_seg_predictor.1} parent=11 // pred_check_branch
        %239 = sbr.rel (%p237) target = $region28
      $region27: #{gated_outer_seg_predictor.1} parent=11 // pred_region
        _
      $region28: #{gated_outer_seg_predictor.1} parent=11 // pred_fallthru
        _
      // Predicated region
      $region29: #{gated_outer_seg_predictor.1} parent=11 // pred_check
        %p240 = pneg %p145
      $region30: #{gated_outer_seg_predictor.1} parent=11 // pred_check_branch
        %242 = sbr.rel (%p240) target = $region32
      $region31: #{gated_outer_seg_predictor.1} parent=11 // pred_region
        _
      $region32: #{gated_outer_seg_predictor.1} parent=11 // pred_fallthru
        _
      // Predicated region
      $region33: #{gated_outer_seg_predictor.1} parent=11 // pred_check
        %p243 = pneg %p166
      $region34: #{gated_outer_seg_predictor.1} parent=11 // pred_check_branch
        %245 = sbr.rel (%p243) target = $region36
      $region35: #{gated_outer_seg_predictor.1} parent=11 // pred_region
        _
      $region36: #{gated_outer_seg_predictor.1} parent=11 // pred_fallthru
        _
      // Predicated region
      $region37: #{gated_outer_seg_predictor.1} parent=11 // pred_check
        %p246 = pneg %p187
      $region38: #{gated_outer_seg_predictor.1} parent=11 // pred_check_branch
        %248 = sbr.rel (%p246) target = $region40
      $region39: #{gated_outer_seg_predictor.1} parent=11 // pred_region
        _
      $region40: #{gated_outer_seg_predictor.1} parent=11 // pred_fallthru
        _
    $region12: #{gated_outer_seg_predictor.1} parent=5 // pred_fallthru
      _
    %p249 = scmp.lt.s32.totalorder %s14, 2
    // Predicated region
    $region41: #{gated_outer_seg_predictor.1} parent=5 // pred_check
      %p250 = pneg %p249
    $region42: #{gated_outer_seg_predictor.1} parent=5 // pred_check_branch
      %252 = sbr.rel (%p250) target = $region44
    $region43: #{gated_outer_seg_predictor.1} parent=5 // pred_region
      // Predicated region
      $region45: #{gated_outer_seg_predictor.1} parent=43 // pred_check
        %p253 = pneg %p34
      $region46: #{gated_outer_seg_predictor.1} parent=43 // pred_check_branch
        %255 = sbr.rel (%p253) target = $region48
      $region47: #{gated_outer_seg_predictor.1} parent=43 // pred_region
        %p256 = scmp.lt.s32.totalorder %s14, 1
        %s257 = scalar_select %p256, %s14, 1
        %s258 = smul.addr %s257, 2
        %s259 = scalar_lea.vmem %s0, %s258
      $region48: #{gated_outer_seg_predictor.1} parent=43 // pred_fallthru
        _
    $region44: #{gated_outer_seg_predictor.1} parent=5 // pred_fallthru
      _
    %p260 = scmp.le.s32.totalorder 1, %s14
    %p261 = scmp.lt.s32.totalorder %s14, 3
    %p262 = pnand %p260, %p261
    %p263 = pneg %p262
    // Predicated region
    $region49: #{gated_outer_seg_predictor.1} parent=5 // pred_check
      _
    $region50: #{gated_outer_seg_predictor.1} parent=5 // pred_check_branch
      %265 = sbr.rel (%p262) target = $region52
    $region51: #{gated_outer_seg_predictor.1} parent=5 // pred_region
      %s266 = ssub.s32 %s14, 1
      %p267 = scmp.lt.s32.totalorder %s19, 1
      %s268 = scalar_select %p267, %s19, 1
      %s269 = smul.addr %s268, 2
      %s270 = scalar_lea.vmem %s0, %s269
      %p271 = pneg %p40
      %p272 = pneg %p37
      %p273 = pneg %p61
      %p274 = pneg %p58
      %p275 = pneg %p82
      %p276 = pneg %p79
      %p277 = pneg %p103
      %p278 = pneg %p100
      %p279 = pneg %p124
      %p280 = pneg %p121
      %p281 = pneg %p145
      %p282 = pneg %p142
      %p283 = pneg %p166
      %p284 = pneg %p163
      %p285 = pneg %p187
      %p286 = pneg %p184
      %p287 = pneg %p213
      %p288 = pneg %p210
      %p289 = scmp.lt.s32.totalorder %s19, 1
      %s290 = scalar_select %p289, %s19, 1
      %s291 = smul.addr %s290, 2
      %s292 = smul.addr %s291, 4
      %s293 = scalar_lea.vmem %s8, %s292
      %p294 = scmp.lt.s32.totalorder %s19, 1
      %s295 = scalar_select %p294, %s19, 1
      %s296 = smul.addr %s295, 2
      %s297 = scalar_lea.vmem %s0, %s296
      %p298 = scmp.lt.s32.totalorder %s19, 1
      %s299 = scalar_select %p298, %s19, 1
      %s300 = smul.addr %s299, 2
      %s301 = smul.addr %s300, 4
      %s302 = scalar_lea.vmem %s8, %s301
      %v304 = vld [vmem:[%s297] sm:$0x3]
      %v305 = vld [vmem:[%s1] sm:$0x1f]
      %v306 = vld [vmem:[%s1 + $0x8] sm:$0x1f]
      %v307 = vsub.f32 1.0, %v305
      %v308 = vsub.f32 1.0, %v306
      %v309 = vpack.c.bf16 %v305, %v305
      %v310 = vpack.c.bf16 %v306, %v306
      %v313 = vrot.slane %v309, 7
      %v314 = vrot.slane %v310, 7
      %v317 = vmul.bf16 %v309, %v313
      %v318 = vmul.bf16 %v310, %v314
      %v320 = vshll.u32 %v309, 16
      %v323 = vshll.u32 %v310, 16
      %v327 = vmul.bf16 %v309, %v320
      %v328 = vmul.bf16 %v310, %v323
      %v329 = vshrl.u32 %v309, 16
      %v331 = vrot.slane %v329, 6
      %v332 = vshrl.u32 %v310, 16
      %v334 = vrot.slane %v332, 6
      %v337 = vmul.bf16 %v309, %v331
      %v338 = vmul.bf16 %v310, %v334
      %v339 = vlaneseq
      %v340 = vshrl.u32 %v339, 7
      %v341 = vlaneseq
      %v342 = vshrl.u32 %v341, 7
      %v343 = vsub.s32 0, %v342
      %v344 = vrot.slane %v304, %v343
      %v345 = vlaneseq
      %v346 = vshrl.u32 %v345, 7
      %v347 = vsub.s32 1, %v346
      %v348 = vrot.slane %v304, %v347
      %vm349 = vcmp.eq.s32.totalorder %v344, %v340
      %vm350 = vcmp.eq.s32.totalorder %v348, %v340
      %v351 = vsel %vm349, 1, 0
      %v352 = vsel %vm350, 1, 0
      %v353 = vcvt.s32.f32 %v351
      %v354 = vcvt.s32.f32 %v352
      %vm355 = vcmp.eq.s32.totalorder %v340, 4
      %v356 = vlaneseq
      %v357 = vshrl.u32 %v356, 7
      %v358 = vsub.s32 0, %v357
      %v359 = vrot.slane %v307, %v358
      %v360 = vlaneseq
      %v361 = vshrl.u32 %v360, 7
      %v362 = vsub.s32 0, %v361
      %v363 = vrot.slane %v308, %v362
      %v364 = vsel %vm355, %v359, %v353
      %v365 = vsel %vm355, %v363, %v354
      %v366 = vpack.c.bf16 %v364, %v364
      %v367 = vpack.c.bf16 %v365, %v365
      %370 = vrot.lane.b32.xlu0 %v366, 17
      %v371 = vpop.permute.xlu0 %370
      %372 = vrot.lane.b32.xlu0 %v367, 17
      %v373 = vpop.permute.xlu0 %372
      %vm374 = vcmask 138240
      %v375 = vsel %vm374, %v371, %v373
      %vm377 = vcmask 138240
      %v380 = vsel %vm377, 0, %v371
      %v383 = vsel %vm377, %v373, 0
      %v386 = vshrl.u32 %v317, 16
      %v387 = vpack.i.b16 %v386, %v386
      %v389 = vlaneseq
      %v390 = vshrl.u32 %v389, 7
      %v391 = vsub.s32 1, %v390
      %v392 = vrot.slane %v387, %v391
      %v394 = vshrl.u32 %v318, 16
      %v395 = vpack.i.b16 %v394, %v394
      %v397 = vlaneseq
      %v398 = vshrl.u32 %v397, 7
      %v399 = vsub.s32 1, %v398
      %v400 = vrot.slane %v395, %v399
      %v401 = vmul.bf16 %v380, %v392
      %v402 = vmul.bf16 %v375, %v400
      %v403 = vpack.i.b16 %v329, %v329
      %v405 = vlaneseq
      %v406 = vshrl.u32 %v405, 7
      %v407 = vsub.s32 1, %v406
      %v408 = vrot.slane %v403, %v407
      %v409 = vpack.i.b16 %v332, %v332
      %v411 = vlaneseq
      %v412 = vshrl.u32 %v411, 7
      %v413 = vsub.s32 1, %v412
      %v414 = vrot.slane %v409, %v413
      %417 = vrot.lane.b32.xlu0 %v408, 1
      %v418 = vpop.permute.xlu0 %417
      %419 = vrot.lane.b32.xlu0 %v414, 1
      %v420 = vpop.permute.xlu0 %419
      %vm421 = vcmask 7168
      %v422 = vsel %vm421, %v418, %v420
      %v426 = vmul.bf16 %v380, %v418
      %v427 = vmul.bf16 %v375, %v422
      %v428 = vmul.bf16 %v383, %v420
      %v430 = vshrl.u32 %v327, 16
      %v431 = vpack.i.b16 %v430, %v430
      %v433 = vlaneseq
      %v434 = vshrl.u32 %v433, 7
      %v435 = vsub.s32 1, %v434
      %v436 = vrot.slane %v431, %v435
      %v438 = vshrl.u32 %v328, 16
      %v439 = vpack.i.b16 %v438, %v438
      %v441 = vlaneseq
      %v442 = vshrl.u32 %v441, 7
      %v443 = vsub.s32 1, %v442
      %v444 = vrot.slane %v439, %v443
      %447 = vrot.lane.b32.xlu0 %v436, 2
      %v448 = vpop.permute.xlu0 %447
      %449 = vrot.lane.b32.xlu0 %v444, 2
      %v450 = vpop.permute.xlu0 %449
      %vm451 = vcmask 15360
      %v452 = vsel %vm451, %v448, %v450
      %v456 = vmul.bf16 %v380, %v448
      %v457 = vmul.bf16 %v375, %v452
      %v458 = vmul.bf16 %v383, %v450
      %v459 = vlaneseq
      %v460 = vshrl.u32 %v459, 7
      %v461 = vsub.s32 0, %v460
      %v462 = vrot.slane %v403, %v461
      %v463 = vlaneseq
      %v464 = vshrl.u32 %v463, 7
      %v465 = vsub.s32 0, %v464
      %v466 = vrot.slane %v409, %v465
      %469 = vrot.lane.b32.xlu0 %v462, 16
      %v470 = vpop.permute.xlu0 %469
      %471 = vrot.lane.b32.xlu0 %v466, 16
      %v472 = vpop.permute.xlu0 %471
      %vm473 = vcmask 130048
      %v474 = vsel %vm473, %v470, %v472
      %v478 = vmul.bf16 %v380, %v470
      %v479 = vmul.bf16 %v375, %v474
      %v480 = vmul.bf16 %v383, %v472
      %v481 = vpack.i.b16 %v309, %v309
      %v483 = vlaneseq
      %v484 = vshrl.u32 %v483, 7
      %v485 = vsub.s32 1, %v484
      %v486 = vrot.slane %v481, %v485
      %v487 = vpack.i.b16 %v310, %v310
      %v489 = vlaneseq
      %v490 = vshrl.u32 %v489, 7
      %v491 = vsub.s32 1, %v490
      %v492 = vrot.slane %v487, %v491
      %495 = vrot.lane.b32.xlu0 %v486, 18
      %v496 = vpop.permute.xlu0 %495
      %497 = vrot.lane.b32.xlu0 %v492, 18
      %v498 = vpop.permute.xlu0 %497
      %vm499 = vcmask 146432
      %v500 = vsel %vm499, %v496, %v498
      %v504 = vmul.bf16 %v380, %v496
      %v505 = vmul.bf16 %v375, %v500
      %v506 = vmul.bf16 %v383, %v498
      %v508 = vpack.i.b16 %v337, %v337
      %v510 = vlaneseq
      %v511 = vshrl.u32 %v510, 7
      %v512 = vsub.s32 2, %v511
      %v513 = vrot.slane %v508, %v512
      %v515 = vpack.i.b16 %v338, %v338
      %v517 = vlaneseq
      %v518 = vshrl.u32 %v517, 7
      %v519 = vsub.s32 2, %v518
      %v520 = vrot.slane %v515, %v519
      %523 = vrot.lane.b32.xlu0 %v513, 32
      %v524 = vpop.permute.xlu0 %523
      %525 = vrot.lane.b32.xlu0 %v520, 32
      %v526 = vpop.permute.xlu0 %525
      %vm527 = vcmask 261120
      %v528 = vsel %vm527, %v524, %v526
      %v532 = vmul.bf16 %v380, %v524
      %v533 = vmul.bf16 %v375, %v528
      %v534 = vmul.bf16 %v383, %v526
      %v535 = vlaneseq
      %v536 = vshrl.u32 %v535, 7
      %v537 = vsub.s32 2, %v536
      %v538 = vrot.slane %v481, %v537
      %v539 = vlaneseq
      %v540 = vshrl.u32 %v539, 7
      %v541 = vsub.s32 2, %v540
      %v542 = vrot.slane %v487, %v541
      %545 = vrot.lane.b32.xlu0 %v538, 33
      %v546 = vpop.permute.xlu0 %545
      %547 = vrot.lane.b32.xlu0 %v542, 33
      %v548 = vpop.permute.xlu0 %547
      %vm549 = vcmask 269312
      %v550 = vsel %vm549, %v546, %v548
      %v554 = vmul.bf16 %v380, %v546
      %v555 = vmul.bf16 %v375, %v550
      %v556 = vmul.bf16 %v383, %v548
      %v557 = vpack.i.b16 %v317, %v317
      %v559 = vlaneseq
      %v560 = vshrl.u32 %v559, 7
      %v561 = vsub.s32 2, %v560
      %v562 = vrot.slane %v557, %v561
      %v563 = vpack.i.b16 %v318, %v318
      %v565 = vlaneseq
      %v566 = vshrl.u32 %v565, 7
      %v567 = vsub.s32 2, %v566
      %v568 = vrot.slane %v563, %v567
      %571 = vrot.lane.b32.xlu0 %v562, 34
      %v572 = vpop.permute.xlu0 %571
      %573 = vrot.lane.b32.xlu0 %v568, 34
      %v574 = vpop.permute.xlu0 %573
      %vm575 = vcmask 277504
      %v576 = vsel %vm575, %v572, %v574
      %v580 = vmul.bf16 %v380, %v572
      %v581 = vmul.bf16 %v375, %v576
      %v582 = vmul.bf16 %v383, %v574
      %v586 = vrot.slane %v426, 4
      %v587 = vrot.slane %v427, 4
      %v588 = vrot.slane %v428, 4
      %589 = vrot.lane.b32.xlu0 %v586, 127
      %v590 = vpop.permute.xlu0 %589
      %591 = vrot.lane.b32.xlu0 %v587, 127
      %v592 = vpop.permute.xlu0 %591
      %593 = vrot.lane.b32.xlu0 %v588, 127
      %v594 = vpop.permute.xlu0 %593
      %vm595 = vcmask 1039360
      %v596 = vsel %vm595, %v590, %v592
      %v597 = vsel %vm595, %v592, %v594
      %601 = vrot.lane.b32.xlu0 %v456, 126
      %v602 = vpop.permute.xlu0 %601
      %603 = vrot.lane.b32.xlu0 %v457, 126
      %v604 = vpop.permute.xlu0 %603
      %605 = vrot.lane.b32.xlu0 %v458, 126
      %v606 = vpop.permute.xlu0 %605
      %vm607 = vcmask 1031168
      %v608 = vsel %vm607, %v602, %v604
      %v609 = vsel %vm607, %v604, %v606
      %v613 = vrot.slane %v478, 4
      %v614 = vrot.slane %v479, 4
      %v615 = vrot.slane %v480, 4
      %616 = vrot.lane.b32.xlu0 %v613, 112
      %v617 = vpop.permute.xlu0 %616
      %618 = vrot.lane.b32.xlu0 %v614, 112
      %v619 = vpop.permute.xlu0 %618
      %620 = vrot.lane.b32.xlu0 %v615, 112
      %v621 = vpop.permute.xlu0 %620
      %vm622 = vcmask 916480
      %v623 = vsel %vm622, %v617, %v619
      %v624 = vsel %vm622, %v619, %v621
      %627 = vrot.lane.b32.xlu0 %v380, 111
      %v628 = vpop.permute.xlu0 %627
      %629 = vrot.lane.b32.xlu0 %v375, 111
      %v630 = vpop.permute.xlu0 %629
      %631 = vrot.lane.b32.xlu0 %v383, 111
      %v632 = vpop.permute.xlu0 %631
      %vm633 = vcmask 908288
      %v634 = vsel %vm633, %v628, %v630
      %v635 = vsel %vm633, %v630, %v632
      %v639 = vrot.slane %v504, 4
      %v640 = vrot.slane %v505, 4
      %v641 = vrot.slane %v506, 4
      %642 = vrot.lane.b32.xlu0 %v639, 110
      %v643 = vpop.permute.xlu0 %642
      %644 = vrot.lane.b32.xlu0 %v640, 110
      %v645 = vpop.permute.xlu0 %644
      %646 = vrot.lane.b32.xlu0 %v641, 110
      %v647 = vpop.permute.xlu0 %646
      %vm648 = vcmask 900096
      %v649 = vsel %vm648, %v643, %v645
      %v650 = vsel %vm648, %v645, %v647
      %654 = vrot.lane.b32.xlu0 %v532, 96
      %v655 = vpop.permute.xlu0 %654
      %656 = vrot.lane.b32.xlu0 %v533, 96
      %v657 = vpop.permute.xlu0 %656
      %658 = vrot.lane.b32.xlu0 %v534, 96
      %v659 = vpop.permute.xlu0 %658
      %vm660 = vcmask 785408
      %v661 = vsel %vm660, %v655, %v657
      %v662 = vsel %vm660, %v657, %v659
      %v666 = vrot.slane %v554, 4
      %v667 = vrot.slane %v555, 4
      %v668 = vrot.slane %v556, 4
      %669 = vrot.lane.b32.xlu0 %v666, 95
      %v670 = vpop.permute.xlu0 %669
      %671 = vrot.lane.b32.xlu0 %v667, 95
      %v672 = vpop.permute.xlu0 %671
      %673 = vrot.lane.b32.xlu0 %v668, 95
      %v674 = vpop.permute.xlu0 %673
      %vm675 = vcmask 777216
      %v676 = vsel %vm675, %v670, %v672
      %v677 = vsel %vm675, %v672, %v674
      %681 = vrot.lane.b32.xlu0 %v580, 94
      %v682 = vpop.permute.xlu0 %681
      %683 = vrot.lane.b32.xlu0 %v581, 94
      %v684 = vpop.permute.xlu0 %683
      %685 = vrot.lane.b32.xlu0 %v582, 94
      %v686 = vpop.permute.xlu0 %685
      %vm687 = vcmask 769024
      %v688 = vsel %vm687, %v682, %v684
      %v689 = vsel %vm687, %v684, %v686
      %vm690 = vcmask 1043456
      %v693 = vsel %vm690, %v401, %v596
      %v697 = vsel %vm690, %v402, %v597
      %v701 = vsel %vm690, %v608, %v623
      %v705 = vsel %vm690, %v609, %v624
      %v709 = vsel %vm690, %v634, %v649
      %v713 = vsel %vm690, %v635, %v650
      %v717 = vsel %vm690, %v661, %v676
      %v721 = vsel %vm690, %v662, %v677
      %v723 = vld [vmem:[%s2] sm:$0xf]
      %v724 = vld [vmem:[%s2 + $0x4] sm:$0xf]
      %v725 = vld [vmem:[%s2 + $0x8] sm:$0xf]
      %v726 = vld [vmem:[%s2 + $0xc] sm:$0xf]
      %v727 = vld [vmem:[%s3] sm:$0xff]
      %v728 = vld [vmem:[%s3 + $0x8] sm:$0xff]
      %v729 = vld [vmem:[%s3 + $0x10] sm:$0xff]
      %v730 = vld [vmem:[%s3 + $0x18] sm:$0xff]
      %732 = vset.pattern.permute.xlu0 0
      %733 = vperm.xlu0 %732, %v727
      %v734 = vpop.permute.xlu0 %733
      %737 = vset.pattern.permute.xlu0 0
      %738 = vperm.xlu0 %737, %v728
      %v739 = vpop.permute.xlu0 %738
      %742 = vset.pattern.permute.xlu0 0
      %743 = vperm.xlu0 %742, %v729
      %v744 = vpop.permute.xlu0 %743
      %747 = vset.pattern.permute.xlu0 0
      %748 = vperm.xlu0 %747, %v730
      %v749 = vpop.permute.xlu0 %748
      %v755 = vunpack.c.l.b16 %v723
      %v756 = vunpack.c.l.b16 %v724
      %v757 = vunpack.c.l.b16 %v725
      %v758 = vunpack.c.l.b16 %v726
      %v759 = vpack.c.b16 %v756, %v755
      %v760 = vpack.c.b16 %v758, %v757
      %vm761 = vcmask 588800
      %v763 = vsel %vm761, %v759, 0
      %v766 = vsel %vm761, %v760, 0
      %v769 = vsel %vm690, %v688, 0
      %v772 = vsel %vm690, %v689, 0
      %774 = vmatprep.subr.bf16.mxu0 %v697
      %775 = vmatpush1.bf16.msra.mxu0 %v693
      %776 = vmatprep.subr.bf16.mxu0 %v705
      %777 = vmatpush1.bf16.msra.mxu0 %v701
      %778 = vmatprep.subr.bf16.mxu0 %v713
      %779 = vmatpush1.bf16.msra.mxu0 %v709
      %780 = vmatprep.subr.bf16.mxu0 %v721
      %781 = vmatpush1.bf16.msra.mxu0 %v717
      %782 = vmatprep.subr.bf16.mxu0 %v772
      %783 = vmatpush1.bf16.msra.mxu0 %v769
      %784 = vmatprep.subr.bf16.mxu0 0
      %785 = vmatpush1.bf16.msra.mxu0 0
      %786 = vmatprep.subr.bf16.mxu0 0
      %787 = vmatpush1.bf16.msra.mxu0 0
      %788 = vmatprep.subr.bf16.mxu0 0
      %789 = vmatpush1.bf16.msra.mxu0 0
      %790 = vmatprep.subr.bf16.mxu0 0
      %791 = vmatpush1.bf16.msra.mxu0 0
      %792 = vmatprep.subr.bf16.mxu0 0
      %793 = vmatpush1.bf16.msra.mxu0 0
      %794 = vmatprep.subr.bf16.mxu0 0
      %795 = vmatpush1.bf16.msra.mxu0 0
      %796 = vmatprep.subr.bf16.mxu0 0
      %797 = vmatpush1.bf16.msra.mxu0 0
      %798 = vmatprep.subr.bf16.mxu0 0
      %799 = vmatpush1.bf16.msra.mxu0 0
      %800 = vmatprep.subr.bf16.mxu0 0
      %801 = vmatpush1.bf16.msra.mxu0 0
      %802 = vmatprep.subr.bf16.mxu0 0
      %803 = vmatpush1.bf16.msra.mxu0 0
      %804 = vmatprep.subr.bf16.mxu0 0
      %805 = vmatpush1.bf16.msra.mxu0 0
      %806 = vmatprep.mubr.bf16.mxu0 0
      %807 = vmatmul.mubr.bf16.gmra.mrb[0].mxu0 %v763
      %v808 = vpop.f32.mrb[0].mxu0
      %v809 = vadd.f32 %v734, %v808
      %v810 = vpop.f32.mrb[0].mxu0
      %v811 = vadd.f32 %v734, %v810
      %v812 = vpop.f32.mrb[0].mxu0
      %v813 = vadd.f32 %v739, %v812
      %v814 = vpop.f32.mrb[0].mxu0
      %v815 = vadd.f32 %v739, %v814
      %816 = vmatprep.mubr.bf16.mxu0 0
      %817 = vmatmul.mubr.bf16.gmra.mrb[0].mxu0 %v766
      %v818 = vpop.f32.mrb[0].mxu0
      %v819 = vadd.f32 %v744, %v818
      %v820 = vpop.f32.mrb[0].mxu0
      %v821 = vadd.f32 %v744, %v820
      %v822 = vpop.f32.mrb[0].mxu0
      %v823 = vadd.f32 %v749, %v822
      %v824 = vpop.f32.mrb[0].mxu0
      %v825 = vadd.f32 %v749, %v824
      %826 = vdwg.mxu0
      %vm827 = vcmp.gt.f32.partialorder %v809, 0.0
      %vm828 = vcmp.gt.f32.partialorder %v811, 0.0
      %vm829 = vcmp.gt.f32.partialorder %v813, 0.0
      %vm830 = vcmp.gt.f32.partialorder %v815, 0.0
      %v831 = vmin.f32 %v809, 0.0
      %v832 = vmin.f32 %v811, 0.0
      %v833 = vmin.f32 %v813, 0.0
      %v834 = vmin.f32 %v815, 0.0
      %v835 = vmul.f32 %v831, 1.442695
      %v836 = vpow.pop %v835
      %v837 = vmul.f32 %v832, 1.442695
      %v838 = vpow.pop %v837
      %v839 = vmul.f32 %v833, 1.442695
      %v840 = vpow.pop %v839
      %v841 = vmul.f32 %v834, 1.442695
      %v842 = vpow.pop %v841
      %v843 = vsub.f32 %v836, 1.0
      %v844 = vsub.f32 %v838, 1.0
      %v845 = vsub.f32 %v840, 1.0
      %v846 = vsub.f32 %v842, 1.0
      %v847 = vsel %vm827, %v809, %v843
      %v848 = vsel %vm828, %v811, %v844
      %v849 = vsel %vm829, %v813, %v845
      %v850 = vsel %vm830, %v815, %v846
      %v851 = vxor.u32 %v819, 2147483648
      %v852 = vxor.u32 %v821, 2147483648
      %v853 = vxor.u32 %v823, 2147483648
      %v854 = vxor.u32 %v825, 2147483648
      %v855 = vmul.f32 %v851, 1.442695
      %v856 = vpow.pop %v855
      %v857 = vmul.f32 %v852, 1.442695
      %v858 = vpow.pop %v857
      %v859 = vmul.f32 %v853, 1.442695
      %v860 = vpow.pop %v859
      %v861 = vmul.f32 %v854, 1.442695
      %v862 = vpow.pop %v861
      %v863 = vadd.f32 %v856, 1.0
      %v864 = vadd.f32 %v858, 1.0
      %v865 = vadd.f32 %v860, 1.0
      %v866 = vadd.f32 %v862, 1.0
      %v867 = vrcp.pop %v863
      %v868 = vmul.f32 1.0, %v867
      %v869 = vrcp.pop %v864
      %v870 = vmul.f32 1.0, %v869
      %v871 = vrcp.pop %v865
      %v872 = vmul.f32 1.0, %v871
      %v873 = vrcp.pop %v866
      %v874 = vmul.f32 1.0, %v873
      %v875 = vmul.f32 %v847, %v868
      %v876 = vmul.f32 %v848, %v870
      %v877 = vmul.f32 %v849, %v872
      %v878 = vmul.f32 %v850, %v874
      %v879 = vpack.c.bf16 %v877, %v875
      %v880 = vpack.c.bf16 %v878, %v876
      %883 = vrot.lane.b32.xlu0 %v879, 17
      %v884 = vpop.permute.xlu0 %883
      %885 = vrot.lane.b32.xlu0 %v880, 17
      %v886 = vpop.permute.xlu0 %885
      %v887 = vsel %vm374, %v884, %v886
      %v890 = vsel %vm377, 0, %v884
      %v893 = vsel %vm377, %v886, 0
      %v895 = vmul.bf16 %v890, %v392
      %v896 = vmul.bf16 %v887, %v400
      %v897 = vmul.bf16 %v890, %v418
      %v898 = vmul.bf16 %v887, %v422
      %v899 = vmul.bf16 %v893, %v420
      %v900 = vmul.bf16 %v890, %v448
      %v901 = vmul.bf16 %v887, %v452
      %v902 = vmul.bf16 %v893, %v450
      %v903 = vmul.bf16 %v890, %v470
      %v904 = vmul.bf16 %v887, %v474
      %v905 = vmul.bf16 %v893, %v472
      %v906 = vmul.bf16 %v890, %v496
      %v907 = vmul.bf16 %v887, %v500
      %v908 = vmul.bf16 %v893, %v498
      %v909 = vmul.bf16 %v890, %v524
      %v910 = vmul.bf16 %v887, %v528
      %v911 = vmul.bf16 %v893, %v526
      %v912 = vmul.bf16 %v890, %v546
      %v913 = vmul.bf16 %v887, %v550
      %v914 = vmul.bf16 %v893, %v548
      %v915 = vmul.bf16 %v890, %v572
      %v916 = vmul.bf16 %v887, %v576
      %v917 = vmul.bf16 %v893, %v574
      %921 = vrot.lane.b32.xlu0 %v897, 127
      %v922 = vpop.permute.xlu0 %921
      %923 = vrot.lane.b32.xlu0 %v898, 127
      %v924 = vpop.permute.xlu0 %923
      %925 = vrot.lane.b32.xlu0 %v899, 127
      %v926 = vpop.permute.xlu0 %925
      %v927 = vsel %vm595, %v922, %v924
      %v928 = vsel %vm595, %v924, %v926
      %934 = vrot.lane.b32.xlu0 %v900, 126
      %v935 = vpop.permute.xlu0 %934
      %936 = vrot.lane.b32.xlu0 %v901, 126
      %v937 = vpop.permute.xlu0 %936
      %938 = vrot.lane.b32.xlu0 %v902, 126
      %v939 = vpop.permute.xlu0 %938
      %v940 = vsel %vm607, %v935, %v937
      %v941 = vsel %vm607, %v937, %v939
      %947 = vrot.lane.b32.xlu0 %v903, 112
      %v948 = vpop.permute.xlu0 %947
      %949 = vrot.lane.b32.xlu0 %v904, 112
      %v950 = vpop.permute.xlu0 %949
      %951 = vrot.lane.b32.xlu0 %v905, 112
      %v952 = vpop.permute.xlu0 %951
      %v953 = vsel %vm622, %v948, %v950
      %v954 = vsel %vm622, %v950, %v952
      %959 = vrot.lane.b32.xlu0 %v890, 111
      %v960 = vpop.permute.xlu0 %959
      %961 = vrot.lane.b32.xlu0 %v887, 111
      %v962 = vpop.permute.xlu0 %961
      %963 = vrot.lane.b32.xlu0 %v893, 111
      %v964 = vpop.permute.xlu0 %963
      %v965 = vsel %vm633, %v960, %v962
      %v966 = vsel %vm633, %v962, %v964
      %972 = vrot.lane.b32.xlu0 %v906, 110
      %v973 = vpop.permute.xlu0 %972
      %974 = vrot.lane.b32.xlu0 %v907, 110
      %v975 = vpop.permute.xlu0 %974
      %976 = vrot.lane.b32.xlu0 %v908, 110
      %v977 = vpop.permute.xlu0 %976
      %v978 = vsel %vm648, %v973, %v975
      %v979 = vsel %vm648, %v975, %v977
      %985 = vrot.lane.b32.xlu0 %v909, 96
      %v986 = vpop.permute.xlu0 %985
      %987 = vrot.lane.b32.xlu0 %v910, 96
      %v988 = vpop.permute.xlu0 %987
      %989 = vrot.lane.b32.xlu0 %v911, 96
      %v990 = vpop.permute.xlu0 %989
      %v991 = vsel %vm660, %v986, %v988
      %v992 = vsel %vm660, %v988, %v990
      %998 = vrot.lane.b32.xlu0 %v912, 95
      %v999 = vpop.permute.xlu0 %998
      %1000 = vrot.lane.b32.xlu0 %v913, 95
      %v1001 = vpop.permute.xlu0 %1000
      %1002 = vrot.lane.b32.xlu0 %v914, 95
      %v1003 = vpop.permute.xlu0 %1002
      %v1004 = vsel %vm675, %v999, %v1001
      %v1005 = vsel %vm675, %v1001, %v1003
      %1011 = vrot.lane.b32.xlu0 %v915, 94
      %v1012 = vpop.permute.xlu0 %1011
      %1013 = vrot.lane.b32.xlu0 %v916, 94
      %v1014 = vpop.permute.xlu0 %1013
      %1015 = vrot.lane.b32.xlu0 %v917, 94
      %v1016 = vpop.permute.xlu0 %1015
      %v1017 = vsel %vm687, %v1012, %v1014
      %v1018 = vsel %vm687, %v1014, %v1016
      %v1021 = vld [vmem:[%s4] sm:$0xff]
      %v1022 = vld [vmem:[%s4 + $0x8] sm:$0xff]
      %v1023 = vld [vmem:[%s4 + $0x10] sm:$0xff]
      %v1024 = vld [vmem:[%s4 + $0x18] sm:$0xff]
      %v1025 = vld [vmem:[%s5] sm:$0xff]
      %v1026 = vld [vmem:[%s5 + $0x8] sm:$0xff]
      %v1027 = vld [vmem:[%s5 + $0x10] sm:$0xff]
      %v1028 = vld [vmem:[%s5 + $0x18] sm:$0xff]
      %1030 = vset.pattern.permute.xlu0 0
      %1031 = vperm.xlu0 %1030, %v1025
      %v1032 = vpop.permute.xlu0 %1031
      %1035 = vset.pattern.permute.xlu0 0
      %1036 = vperm.xlu0 %1035, %v1026
      %v1037 = vpop.permute.xlu0 %1036
      %1040 = vset.pattern.permute.xlu0 0
      %1041 = vperm.xlu0 %1040, %v1027
      %v1042 = vpop.permute.xlu0 %1041
      %1045 = vset.pattern.permute.xlu0 0
      %1046 = vperm.xlu0 %1045, %v1028
      %v1047 = vpop.permute.xlu0 %1046
      %v1053 = vunpack.c.l.b16 %v1021
      %v1054 = vunpack.c.h.b16 %v1021
      %v1055 = vunpack.c.l.b16 %v1022
      %v1056 = vunpack.c.h.b16 %v1022
      %v1057 = vunpack.c.l.b16 %v1023
      %v1058 = vunpack.c.h.b16 %v1023
      %v1059 = vunpack.c.l.b16 %v1024
      %v1060 = vunpack.c.h.b16 %v1024
      %v1061 = vpack.c.b16 %v1055, %v1053
      %v1062 = vpack.c.b16 %v1056, %v1054
      %v1063 = vpack.c.b16 %v1059, %v1057
      %v1064 = vpack.c.b16 %v1060, %v1058
      %vm1067 = vcmask 130048
      %v1069 = vsel %vm1067, %v1062, 0
      %v1072 = vsel %vm1067, %v1064, 0
      %1074 = vmatprep.subr.bf16.mxu0 %v896
      %1075 = vmatpush1.bf16.msra.mxu0 %v895
      %1076 = vmatprep.subr.bf16.mxu0 %v928
      %1077 = vmatpush1.bf16.msra.mxu0 %v927
      %1078 = vmatprep.subr.bf16.mxu0 %v941
      %1079 = vmatpush1.bf16.msra.mxu0 %v940
      %1080 = vmatprep.subr.bf16.mxu0 %v954
      %1081 = vmatpush1.bf16.msra.mxu0 %v953
      %1082 = vmatprep.subr.bf16.mxu0 %v966
      %1083 = vmatpush1.bf16.msra.mxu0 %v965
      %1084 = vmatprep.subr.bf16.mxu0 %v979
      %1085 = vmatpush1.bf16.msra.mxu0 %v978
      %1086 = vmatprep.subr.bf16.mxu0 %v992
      %1087 = vmatpush1.bf16.msra.mxu0 %v991
      %1088 = vmatprep.subr.bf16.mxu0 %v1005
      %1089 = vmatpush1.bf16.msra.mxu0 %v1004
      %1090 = vmatprep.subr.bf16.mxu0 %v1018
      %1091 = vmatpush1.bf16.msra.mxu0 %v1017
      %1092 = vmatprep.subr.bf16.mxu0 0
      %1093 = vmatpush1.bf16.msra.mxu0 0
      %1094 = vmatprep.subr.bf16.mxu0 0
      %1095 = vmatpush1.bf16.msra.mxu0 0
      %1096 = vmatprep.subr.bf16.mxu0 0
      %1097 = vmatpush1.bf16.msra.mxu0 0
      %1098 = vmatprep.subr.bf16.mxu0 0
      %1099 = vmatpush1.bf16.msra.mxu0 0
      %1100 = vmatprep.subr.bf16.mxu0 0
      %1101 = vmatpush1.bf16.msra.mxu0 0
      %1102 = vmatprep.subr.bf16.mxu0 0
      %1103 = vmatpush1.bf16.msra.mxu0 0
      %1104 = vmatprep.subr.bf16.mxu0 0
      %1105 = vmatpush1.bf16.msra.mxu0 0
      %1106 = vmatprep.mubr.bf16.mxu0 %v1069
      %1107 = vmatmul.mubr.bf16.gmra.mrb[0].mxu0 %v1061
      %v1108 = vpop.f32.mrb[0].mxu0
      %v1109 = vadd.f32 %v1032, %v1108
      %v1110 = vpop.f32.mrb[0].mxu0
      %v1111 = vadd.f32 %v1032, %v1110
      %v1112 = vpop.f32.mrb[0].mxu0
      %v1113 = vadd.f32 %v1037, %v1112
      %v1114 = vpop.f32.mrb[0].mxu0
      %v1115 = vadd.f32 %v1037, %v1114
      %1116 = vmatprep.mubr.bf16.mxu0 %v1072
      %1117 = vmatmul.mubr.bf16.gmra.mrb[0].mxu0 %v1063
      %v1118 = vpop.f32.mrb[0].mxu0
      %v1119 = vadd.f32 %v1042, %v1118
      %v1120 = vpop.f32.mrb[0].mxu0
      %v1121 = vadd.f32 %v1042, %v1120
      %v1122 = vpop.f32.mrb[0].mxu0
      %v1123 = vadd.f32 %v1047, %v1122
      %v1124 = vpop.f32.mrb[0].mxu0
      %v1125 = vadd.f32 %v1047, %v1124
      %1126 = vdwg.mxu0
      %vm1127 = vcmp.gt.f32.partialorder %v1109, 0.0
      %vm1128 = vcmp.gt.f32.partialorder %v1111, 0.0
      %vm1129 = vcmp.gt.f32.partialorder %v1113, 0.0
      %vm1130 = vcmp.gt.f32.partialorder %v1115, 0.0
      %v1131 = vmin.f32 %v1109, 0.0
      %v1132 = vmin.f32 %v1111, 0.0
      %v1133 = vmin.f32 %v1113, 0.0
      %v1134 = vmin.f32 %v1115, 0.0
      %v1135 = vmul.f32 %v1131, 1.442695
      %v1136 = vpow.pop %v1135
      %v1137 = vmul.f32 %v1132, 1.442695
      %v1138 = vpow.pop %v1137
      %v1139 = vmul.f32 %v1133, 1.442695
      %v1140 = vpow.pop %v1139
      %v1141 = vmul.f32 %v1134, 1.442695
      %v1142 = vpow.pop %v1141
      %v1143 = vsub.f32 %v1136, 1.0
      %v1144 = vsub.f32 %v1138, 1.0
      %v1145 = vsub.f32 %v1140, 1.0
      %v1146 = vsub.f32 %v1142, 1.0
      %v1147 = vsel %vm1127, %v1109, %v1143
      %v1148 = vsel %vm1128, %v1111, %v1144
      %v1149 = vsel %vm1129, %v1113, %v1145
      %v1150 = vsel %vm1130, %v1115, %v1146
      %v1151 = vxor.u32 %v1119, 2147483648
      %v1152 = vxor.u32 %v1121, 2147483648
      %v1153 = vxor.u32 %v1123, 2147483648
      %v1154 = vxor.u32 %v1125, 2147483648
      %v1155 = vmul.f32 %v1151, 1.442695
      %v1156 = vpow.pop %v1155
      %v1157 = vmul.f32 %v1152, 1.442695
      %v1158 = vpow.pop %v1157
      %v1159 = vmul.f32 %v1153, 1.442695
      %v1160 = vpow.pop %v1159
      %v1161 = vmul.f32 %v1154, 1.442695
      %v1162 = vpow.pop %v1161
      %v1163 = vadd.f32 %v1156, 1.0
      %v1164 = vadd.f32 %v1158, 1.0
      %v1165 = vadd.f32 %v1160, 1.0
      %v1166 = vadd.f32 %v1162, 1.0
      %v1167 = vrcp.pop %v1163
      %v1168 = vmul.f32 1.0, %v1167
      %v1169 = vrcp.pop %v1164
      %v1170 = vmul.f32 1.0, %v1169
      %v1171 = vrcp.pop %v1165
      %v1172 = vmul.f32 1.0, %v1171
      %v1173 = vrcp.pop %v1166
      %v1174 = vmul.f32 1.0, %v1173
      %v1175 = vmul.f32 %v1147, %v1168
      %v1176 = vmul.f32 %v1148, %v1170
      %v1177 = vmul.f32 %v1149, %v1172
      %v1178 = vmul.f32 %v1150, %v1174
      %v1179 = vpack.c.bf16 %v1177, %v1175
      %v1180 = vpack.c.bf16 %v1178, %v1176
      %1183 = vrot.lane.b32.xlu0 %v1179, 17
      %v1184 = vpop.permute.xlu0 %1183
      %1185 = vrot.lane.b32.xlu0 %v1180, 17
      %v1186 = vpop.permute.xlu0 %1185
      %v1187 = vsel %vm374, %v1184, %v1186
      %v1190 = vsel %vm377, 0, %v1184
      %v1193 = vsel %vm377, %v1186, 0
      %v1195 = vmul.bf16 %v1190, %v392
      %v1196 = vmul.bf16 %v1187, %v400
      %v1197 = vmul.bf16 %v1190, %v418
      %v1198 = vmul.bf16 %v1187, %v422
      %v1199 = vmul.bf16 %v1193, %v420
      %v1200 = vmul.bf16 %v1190, %v448
      %v1201 = vmul.bf16 %v1187, %v452
      %v1202 = vmul.bf16 %v1193, %v450
      %v1203 = vmul.bf16 %v1190, %v470
      %v1204 = vmul.bf16 %v1187, %v474
      %v1205 = vmul.bf16 %v1193, %v472
      %v1206 = vmul.bf16 %v1190, %v496
      %v1207 = vmul.bf16 %v1187, %v500
      %v1208 = vmul.bf16 %v1193, %v498
      %v1209 = vmul.bf16 %v1190, %v524
      %v1210 = vmul.bf16 %v1187, %v528
      %v1211 = vmul.bf16 %v1193, %v526
      %v1212 = vmul.bf16 %v1190, %v546
      %v1213 = vmul.bf16 %v1187, %v550
      %v1214 = vmul.bf16 %v1193, %v548
      %v1215 = vmul.bf16 %v1190, %v572
      %v1216 = vmul.bf16 %v1187, %v576
      %v1217 = vmul.bf16 %v1193, %v574
      %1221 = vrot.lane.b32.xlu0 %v1197, 127
      %v1222 = vpop.permute.xlu0 %1221
      %1223 = vrot.lane.b32.xlu0 %v1198, 127
      %v1224 = vpop.permute.xlu0 %1223
      %1225 = vrot.lane.b32.xlu0 %v1199, 127
      %v1226 = vpop.permute.xlu0 %1225
      %v1227 = vsel %vm595, %v1222, %v1224
      %v1228 = vsel %vm595, %v1224, %v1226
      %1234 = vrot.lane.b32.xlu0 %v1200, 126
      %v1235 = vpop.permute.xlu0 %1234
      %1236 = vrot.lane.b32.xlu0 %v1201, 126
      %v1237 = vpop.permute.xlu0 %1236
      %1238 = vrot.lane.b32.xlu0 %v1202, 126
      %v1239 = vpop.permute.xlu0 %1238
      %v1240 = vsel %vm607, %v1235, %v1237
      %v1241 = vsel %vm607, %v1237, %v1239
      %1247 = vrot.lane.b32.xlu0 %v1203, 112
      %v1248 = vpop.permute.xlu0 %1247
      %1249 = vrot.lane.b32.xlu0 %v1204, 112
      %v1250 = vpop.permute.xlu0 %1249
      %1251 = vrot.lane.b32.xlu0 %v1205, 112
      %v1252 = vpop.permute.xlu0 %1251
      %v1253 = vsel %vm622, %v1248, %v1250
      %v1254 = vsel %vm622, %v1250, %v1252
      %1259 = vrot.lane.b32.xlu0 %v1190, 111
      %v1260 = vpop.permute.xlu0 %1259
      %1261 = vrot.lane.b32.xlu0 %v1187, 111
      %v1262 = vpop.permute.xlu0 %1261
      %1263 = vrot.lane.b32.xlu0 %v1193, 111
      %v1264 = vpop.permute.xlu0 %1263
      %v1265 = vsel %vm633, %v1260, %v1262
      %v1266 = vsel %vm633, %v1262, %v1264
      %1272 = vrot.lane.b32.xlu0 %v1206, 110
      %v1273 = vpop.permute.xlu0 %1272
      %1274 = vrot.lane.b32.xlu0 %v1207, 110
      %v1275 = vpop.permute.xlu0 %1274
      %1276 = vrot.lane.b32.xlu0 %v1208, 110
      %v1277 = vpop.permute.xlu0 %1276
      %v1278 = vsel %vm648, %v1273, %v1275
      %v1279 = vsel %vm648, %v1275, %v1277
      %1285 = vrot.lane.b32.xlu0 %v1209, 96
      %v1286 = vpop.permute.xlu0 %1285
      %1287 = vrot.lane.b32.xlu0 %v1210, 96
      %v1288 = vpop.permute.xlu0 %1287
      %1289 = vrot.lane.b32.xlu0 %v1211, 96
      %v1290 = vpop.permute.xlu0 %1289
      %v1291 = vsel %vm660, %v1286, %v1288
      %v1292 = vsel %vm660, %v1288, %v1290
      %1298 = vrot.lane.b32.xlu0 %v1212, 95
      %v1299 = vpop.permute.xlu0 %1298
      %1300 = vrot.lane.b32.xlu0 %v1213, 95
      %v1301 = vpop.permute.xlu0 %1300
      %1302 = vrot.lane.b32.xlu0 %v1214, 95
      %v1303 = vpop.permute.xlu0 %1302
      %v1304 = vsel %vm675, %v1299, %v1301
      %v1305 = vsel %vm675, %v1301, %v1303
      %1311 = vrot.lane.b32.xlu0 %v1215, 94
      %v1312 = vpop.permute.xlu0 %1311
      %1313 = vrot.lane.b32.xlu0 %v1216, 94
      %v1314 = vpop.permute.xlu0 %1313
      %1315 = vrot.lane.b32.xlu0 %v1217, 94
      %v1316 = vpop.permute.xlu0 %1315
      %v1317 = vsel %vm687, %v1312, %v1314
      %v1318 = vsel %vm687, %v1314, %v1316
      %v1321 = vld [vmem:[%s6] sm:$0xf]
      %v1322 = vld [vmem:[%s7] sm:$0xf]
      %1324 = vset.pattern.permute.xlu0 0
      %1325 = vperm.xlu0 %1324, %v1322
      %v1326 = vpop.permute.xlu0 %1325
      %v1330 = vunpack.c.l.s4 1983009808
      %v1331 = vunpack.c.0.s8 %v1330
      %v1332 = vlaneseq
      %v1333 = vshrl.u32 %v1332, 7
      %v1334 = vsub.s32 %v1331, %v1333
      %v1335 = vrot.slane %v1321, %v1334
      %v1336 = vcombine.high %v1335, %v1335
      %v1339 = vsel %vm1067, %v1336, 0
      %1341 = vmatprep.subr.bf16.mxu0 %v1196
      %1342 = vmatpush1.bf16.msra.mxu0 %v1195
      %1343 = vmatprep.subr.bf16.mxu0 %v1228
      %1344 = vmatpush1.bf16.msra.mxu0 %v1227
      %1345 = vmatprep.subr.bf16.mxu0 %v1241
      %1346 = vmatpush1.bf16.msra.mxu0 %v1240
      %1347 = vmatprep.subr.bf16.mxu0 %v1254
      %1348 = vmatpush1.bf16.msra.mxu0 %v1253
      %1349 = vmatprep.subr.bf16.mxu0 %v1266
      %1350 = vmatpush1.bf16.msra.mxu0 %v1265
      %1351 = vmatprep.subr.bf16.mxu0 %v1279
      %1352 = vmatpush1.bf16.msra.mxu0 %v1278
      %1353 = vmatprep.subr.bf16.mxu0 %v1292
      %1354 = vmatpush1.bf16.msra.mxu0 %v1291
      %1355 = vmatprep.subr.bf16.mxu0 %v1305
      %1356 = vmatpush1.bf16.msra.mxu0 %v1304
      %1357 = vmatprep.subr.bf16.mxu0 %v1318
      %1358 = vmatpush1.bf16.msra.mxu0 %v1317
      %1359 = vmatprep.subr.bf16.mxu0 0
      %1360 = vmatpush1.bf16.msra.mxu0 0
      %1361 = vmatprep.subr.bf16.mxu0 0
      %1362 = vmatpush1.bf16.msra.mxu0 0
      %1363 = vmatprep.subr.bf16.mxu0 0
      %1364 = vmatpush1.bf16.msra.mxu0 0
      %1365 = vmatprep.subr.bf16.mxu0 0
      %1366 = vmatpush1.bf16.msra.mxu0 0
      %1367 = vmatprep.subr.bf16.mxu0 0
      %1368 = vmatpush1.bf16.msra.mxu0 0
      %1369 = vmatprep.subr.bf16.mxu0 0
      %1370 = vmatpush1.bf16.msra.mxu0 0
      %1371 = vmatprep.subr.bf16.mxu0 0
      %1372 = vmatpush1.bf16.msra.mxu0 0
      %1373 = vmatprep.mubr.bf16.mxu0 %v1339
      %1374 = vmatmul.mubr.bf16.gmra.mrb[0].mxu0 %v1335
      %v1375 = vpop.f32.mrb[0].mxu0
      %v1376 = vadd.f32 %v1326, %v1375
      %v1377 = vpop.f32.mrb[0].mxu0
      %v1378 = vadd.f32 %v1326, %v1377
      %v1379 = vpop.f32.mrb[0].mxu0
      %v1380 = vpop.f32.mrb[0].mxu0
      %1381 = vdwg.mxu0
      %v1382 = vlaneseq
      %v1383 = vshrl.u32 %v1382, 7
      %v1384 = vsub.s32 0, %v1383
      %v1385 = vrot.slane %v305, %v1384
      %v1386 = vlaneseq
      %v1387 = vshrl.u32 %v1386, 7
      %v1388 = vsub.s32 0, %v1387
      %v1389 = vrot.slane %v306, %v1388
      %v1390 = vmul.f32 %v353, %v1385
      %v1391 = vmul.f32 %v354, %v1389
      %v1392 = vmul.f32 %v1376, %v359
      %v1393 = vmul.f32 %v1378, %v363
      %v1394 = vadd.f32 %v1390, %v1392
      %v1395 = vadd.f32 %v1391, %v1393
      %v1398 = vcombine.low %v1394, %v1395
      %1400 = vst [vmem:[%s302] sm:$0xff] %v1398
      %p1401 = scmp.lt.s32.totalorder %s19, 1
      %s1402 = scalar_select %p1401, %s19, 1
      %s1403 = smul.addr %s1402, 2
      %s1404 = smul.addr %s1403, 4
      %s1405 = scalar_lea.vmem %s8, %s1404
      // Predicated region
      $region53: #{gated_outer_seg_predictor.1} parent=51 // pred_check
        %p1406 = pneg %p210
      $region54: #{gated_outer_seg_predictor.1} parent=51 // pred_check_branch
        %1408 = sbr.rel (%p1406) target = $region56
      $region55: #{gated_outer_seg_predictor.1} parent=51 // pred_region
        _
      $region56: #{gated_outer_seg_predictor.1} parent=51 // pred_fallthru
        _
    $region52: #{gated_outer_seg_predictor.1} parent=5 // pred_fallthru
      _
    %p1409 = scmp.le.s32.totalorder 2, %s14
    // Predicated region
    $region57: #{gated_outer_seg_predictor.1} parent=5 // pred_check
      %p1410 = pneg %p1409
    $region58: #{gated_outer_seg_predictor.1} parent=5 // pred_check_branch
      %1412 = sbr.rel (%p1410) target = $region60
    $region59: #{gated_outer_seg_predictor.1} parent=5 // pred_region
      %s1413 = ssub.s32 %s14, 2
      // Predicated region
      $region61: #{gated_outer_seg_predictor.1} parent=59 // pred_check
        %p1414 = pneg %p216
      $region62: #{gated_outer_seg_predictor.1} parent=59 // pred_check_branch
        %1416 = sbr.rel (%p1414) target = $region64
      $region63: #{gated_outer_seg_predictor.1} parent=59 // pred_region
        %p1417 = scmp.lt.s32.totalorder %s20, 1
        %s1418 = scalar_select %p1417, %s20, 1
        %s1419 = smul.addr %s1418, 2
        %s1420 = smul.addr %s1419, 4
        %s1421 = scalar_lea.vmem %s8, %s1420
      $region64: #{gated_outer_seg_predictor.1} parent=59 // pred_fallthru
        _
    $region60: #{gated_outer_seg_predictor.1} parent=5 // pred_fallthru
      _
  $region6: #{gated_outer_seg_predictor.1} parent=0 // loop_footer
    %s18 = sadd.s32 1, %s14
  $region7: #{gated_outer_seg_predictor.1} parent=0 // loop_footer_branch
    %13 = sbr.rel target = $region3
  $region8: #{gated_outer_seg_predictor.1} parent=0 // loop_exit
    _

</llo_original>
